<compile_context>
chip_gen: v7x
topology: tpu7x:2x2x1
jax: 0.10.0
libtpu: 0.0.40
codegen_flags: <defaults>
</compile_context>

<pallas_src>
import functools
import math

import jax
import jax.numpy as jnp
from jax import lax
from jax.experimental import pallas as pl
from jax.experimental.pallas import tpu as pltpu

DROP_P = 0.05


def _attn_kernel(q_ref, k_ref, v_ref, mask_ref, keep_ref, o_ref, *, dropout_p):
    # Block shapes:
    #   q/k/v_ref : (1, HB, S, D)
    #   mask_ref  : (1, 1,  S, S)   (broadcast over heads)
    #   keep_ref  : (1, HB, S, S)   dropout keep mask in {0, 1}
    #   o_ref     : (1, HB, S, D)
    d = q_ref.shape[-1]
    scale = 1.0 / math.sqrt(d)

    # Fold 1/sqrt(d) into q (HB*S*D multiplies instead of HB*S*S), then cast
    # q/k to bf16 for the native MXU path (f32 accumulation below).
    q = (q_ref[0] * scale).astype(jnp.bfloat16)          # (HB, S, D)
    k = k_ref[0].astype(jnp.bfloat16)                    # (HB, S, D)

    # NT matmul: contract D of q against D of k, batched over heads.
    s = lax.dot_general(
        q, k,
        dimension_numbers=(((2,), (2,)), ((0,), (0,))),
        preferred_element_type=jnp.float32,
    )                                                    # (HB, S, S) f32
    s = s + mask_ref[0]                                  # (1,S,S) -> (HB,S,S)

    # Softmax over the last axis.
    s_max = jnp.max(s, axis=-1, keepdims=True)
    p = jnp.exp(s - s_max)
    denom = jnp.sum(p, axis=-1, keepdims=True)
    # Fold the dropout 1/(1-p) rescale into the (HB, S, 1) reciprocal column.
    inv = pl.reciprocal(denom, approx=True) * (1.0 / (1.0 - dropout_p))

    # Apply normalization + dropout keep mask (mask is {0, 1}).
    attn = p * inv * keep_ref[0]                         # (HB, S, S) f32

    # Weighted sum of values (bf16 inputs, f32 accumulation).
    out = lax.dot_general(
        attn.astype(jnp.bfloat16),
        v_ref[0].astype(jnp.bfloat16),
        dimension_numbers=(((2,), (1,)), ((0,), (0,))),
        preferred_element_type=jnp.float32,
    )                                                    # (HB, S, D) f32
    o_ref[0] = out.astype(o_ref.dtype)


def attention(query, key, value, attn_mask, *, dropout_p=DROP_P,
              rng_key=None, head_block=None):
    B, H, S, D = query.shape
    assert key.shape == (B, H, S, D) and value.shape == (B, H, S, D)
    assert attn_mask.shape == (B, 1, S, S)

    if head_block is None:
        head_block = H
    assert H % head_block == 0
    hb = head_block

    if rng_key is None:
        rng_key = jax.random.PRNGKey(0)
    # Dropout keep mask generated host/XLA-side (hardware PRNG primitives are
    # not available in the CPU interpret path).  {0, 1} with P(keep) = 1 - p.
    keep = jax.random.bernoulli(
        rng_key, p=1.0 - dropout_p, shape=(B, H, S, S)
    ).astype(jnp.float32)

    kernel = functools.partial(_attn_kernel, dropout_p=dropout_p)

    return pl.pallas_call(
        kernel,
        out_shape=jax.ShapeDtypeStruct((B, H, S, D), jnp.float32),
        grid=(B, H // hb),
        in_specs=[
            pl.BlockSpec((1, hb, S, D), lambda b, h: (b, h, 0, 0)),  # q
            pl.BlockSpec((1, hb, S, D), lambda b, h: (b, h, 0, 0)),  # k
            pl.BlockSpec((1, hb, S, D), lambda b, h: (b, h, 0, 0)),  # v
            pl.BlockSpec((1, 1, S, S), lambda b, h: (b, 0, 0, 0)),   # mask
            pl.BlockSpec((1, hb, S, S), lambda b, h: (b, h, 0, 0)),  # keep mask
        ],
        out_specs=pl.BlockSpec((1, hb, S, D), lambda b, h: (b, h, 0, 0)),
        compiler_params=pltpu.CompilerParams(
            dimension_semantics=("parallel", "parallel"),
        ),
    )(query, key, value, attn_mask, keep)


if __name__ == "__main__":
    # Small shapes consistent with the module's (B, H, S, D) attention layout.
    # D = 128 keeps all tiles lane-dense (the real module uses D = 1536).
    B, H, S, D = 2, 4, 128, 128

    key0 = jax.random.PRNGKey(0)
    kq, kk, kv, km, kd = jax.random.split(key0, 5)

    query = jax.random.normal(kq, (B, H, S, D), dtype=jnp.float32)
    key_t = jax.random.normal(kk, (B, H, S, D), dtype=jnp.float32)
    value = jax.random.normal(kv, (B, H, S, D), dtype=jnp.float32)
    attn_mask = jax.random.normal(km, (B, 1, S, S), dtype=jnp.float32)

    out = attention(query, key_t, value, attn_mask, rng_key=kd)
    jax.block_until_ready(out)

    assert out.shape == (B, H, S, D)
    assert jnp.all(jnp.isfinite(out))
    print("KERNEL_OK")
</pallas_src>

<mosaic_0001>
module attributes {stable_mosaic.version = 11 : i64} {
  func.func @_attn_kernel(%arg0: i32, %arg1: i32, %arg2: memref<1x4x128x128xf32, #tpu.memory_space<vmem>>, %arg3: memref<1x4x128x128xf32, #tpu.memory_space<vmem>>, %arg4: memref<1x4x128x128xf32, #tpu.memory_space<vmem>>, %arg5: memref<1x1x128x128xf32, #tpu.memory_space<vmem>>, %arg6: memref<1x4x128x128xf32, #tpu.memory_space<vmem>>, %arg7: memref<1x4x128x128xf32, #tpu.memory_space<vmem>>) attributes {dimension_semantics = [#tpu.dimension_semantics<parallel>, #tpu.dimension_semantics<parallel>], iteration_bounds = array<i64: 2, 1>, scalar_prefetch = 0 : i64, scratch_operands = 0 : i64, tpu.core_type = #tpu.core_type<tc>, window_params = [{transform_indices = @transform_0, window_bounds = array<i64: 1, 4, 128, 128>}, {transform_indices = @transform_1, window_bounds = array<i64: 1, 4, 128, 128>}, {transform_indices = @transform_2, window_bounds = array<i64: 1, 4, 128, 128>}, {transform_indices = @transform_3, window_bounds = array<i64: 1, 1, 128, 128>}, {transform_indices = @transform_4, window_bounds = array<i64: 1, 4, 128, 128>}, {transform_indices = @transform_5, window_bounds = array<i64: 1, 4, 128, 128>}]} {
    %c0 = arith.constant 0 : index
    %c0_0 = arith.constant 0 : index
    %c0_1 = arith.constant 0 : index
    %c0_2 = arith.constant 0 : index
    %0 = vector.load %arg2[%c0, %c0_0, %c0_1, %c0_2] : memref<1x4x128x128xf32, #tpu.memory_space<vmem>>, vector<1x4x128x128xf32>
    %1 = vector.shape_cast %0 : vector<1x4x128x128xf32> to vector<4x128x128xf32>
    %cst = arith.constant 0.0883883461 : f32
    %2 = vector.broadcast %cst : f32 to vector<4x128x128xf32>
    %3 = arith.mulf %1, %2 : vector<4x128x128xf32>
    %4 = arith.truncf %3 : vector<4x128x128xf32> to vector<4x128x128xbf16>
    %c0_3 = arith.constant 0 : index
    %c0_4 = arith.constant 0 : index
    %c0_5 = arith.constant 0 : index
    %c0_6 = arith.constant 0 : index
    %5 = vector.load %arg3[%c0_3, %c0_4, %c0_5, %c0_6] : memref<1x4x128x128xf32, #tpu.memory_space<vmem>>, vector<1x4x128x128xf32>
    %6 = vector.shape_cast %5 : vector<1x4x128x128xf32> to vector<4x128x128xf32>
    %7 = arith.truncf %6 : vector<4x128x128xf32> to vector<4x128x128xbf16>
    %cst_7 = arith.constant dense<0.000000e+00> : vector<4x128x128xf32>
    %8 = tpu.matmul %4, %7, %cst_7 {dimension_numbers = #tpu.dot_dimension_numbers<[2], [2], [1], [1], [0, 0, 0, 1, 1, 1], [0], [0]>} : vector<4x128x128xbf16>, vector<4x128x128xbf16>, vector<4x128x128xf32> -> vector<4x128x128xf32>
    %c0_8 = arith.constant 0 : index
    %c0_9 = arith.constant 0 : index
    %c0_10 = arith.constant 0 : index
    %c0_11 = arith.constant 0 : index
    %9 = vector.load %arg5[%c0_8, %c0_9, %c0_10, %c0_11] : memref<1x1x128x128xf32, #tpu.memory_space<vmem>>, vector<1x1x128x128xf32>
    %10 = vector.shape_cast %9 : vector<1x1x128x128xf32> to vector<1x128x128xf32>
    %11 = vector.broadcast %10 : vector<1x128x128xf32> to vector<4x128x128xf32>
    %12 = arith.addf %8, %11 : vector<4x128x128xf32>
    %cst_12 = arith.constant dense<0xFF800000> : vector<4x128xf32>
    %13 = vector.multi_reduction <maximumf>, %12, %cst_12 [2] : vector<4x128x128xf32> to vector<4x128xf32>
    %14 = vector.shape_cast %13 : vector<4x128xf32> to vector<4x128x1xf32>
    %15 = vector.broadcast %14 : vector<4x128x1xf32> to vector<4x128x128xf32>
    %16 = arith.subf %12, %15 : vector<4x128x128xf32>
    %17 = math.exp %16 : vector<4x128x128xf32>
    %cst_13 = arith.constant dense<0.000000e+00> : vector<4x128xf32>
    %18 = vector.multi_reduction <add>, %17, %cst_13 [2] : vector<4x128x128xf32> to vector<4x128xf32>
    %19 = vector.shape_cast %18 : vector<4x128xf32> to vector<4x128x1xf32>
    %20 = tpu.reciprocal %19 {approx = true} : vector<4x128x1xf32> -> vector<4x128x1xf32>
    %cst_14 = arith.constant 1.05263162 : f32
    %21 = vector.broadcast %cst_14 : f32 to vector<4x128x1xf32>
    %22 = arith.mulf %20, %21 : vector<4x128x1xf32>
    %23 = vector.broadcast %22 : vector<4x128x1xf32> to vector<4x128x128xf32>
    %24 = arith.mulf %17, %23 : vector<4x128x128xf32>
    %c0_15 = arith.constant 0 : index
    %c0_16 = arith.constant 0 : index
    %c0_17 = arith.constant 0 : index
    %c0_18 = arith.constant 0 : index
    %25 = vector.load %arg6[%c0_15, %c0_16, %c0_17, %c0_18] : memref<1x4x128x128xf32, #tpu.memory_space<vmem>>, vector<1x4x128x128xf32>
    %26 = vector.shape_cast %25 : vector<1x4x128x128xf32> to vector<4x128x128xf32>
    %27 = arith.mulf %24, %26 : vector<4x128x128xf32>
    %28 = arith.truncf %27 : vector<4x128x128xf32> to vector<4x128x128xbf16>
    %c0_19 = arith.constant 0 : index
    %c0_20 = arith.constant 0 : index
    %c0_21 = arith.constant 0 : index
    %c0_22 = arith.constant 0 : index
    %29 = vector.load %arg4[%c0_19, %c0_20, %c0_21, %c0_22] : memref<1x4x128x128xf32, #tpu.memory_space<vmem>>, vector<1x4x128x128xf32>
    %30 = vector.shape_cast %29 : vector<1x4x128x128xf32> to vector<4x128x128xf32>
    %31 = arith.truncf %30 : vector<4x128x128xf32> to vector<4x128x128xbf16>
    %cst_23 = arith.constant dense<0.000000e+00> : vector<4x128x128xf32>
    %32 = tpu.matmul %28, %31, %cst_23 {dimension_numbers = #tpu.dot_dimension_numbers<[2], [1], [1], [2], [0, 0, 0, 1, 1, 2], [0], [0]>} : vector<4x128x128xbf16>, vector<4x128x128xbf16>, vector<4x128x128xf32> -> vector<4x128x128xf32>
    %c0_24 = arith.constant 0 : index
    %c0_25 = arith.constant 0 : index
    %c0_26 = arith.constant 0 : index
    %c0_27 = arith.constant 0 : index
    %33 = vector.load %arg7[%c0_24, %c0_25, %c0_26, %c0_27] : memref<1x4x128x128xf32, #tpu.memory_space<vmem>>, vector<1x4x128x128xf32>
    %34 = vector.shape_cast %33 : vector<1x4x128x128xf32> to vector<4x128x128xf32>
    %35 = vector.shape_cast %32 : vector<4x128x128xf32> to vector<1x4x128x128xf32>
    tpu.vector_store %arg7[%c0_24, %c0_25, %c0_26, %c0_27], %35 {strides = array<i32>} : memref<1x4x128x128xf32, #tpu.memory_space<vmem>>, vector<1x4x128x128xf32>,
    return
  }
  func.func @transform_0(%arg0: i32, %arg1: i32) -> (i32, i32, i32, i32) {
    %c0_i32 = arith.constant 0 : i32
    %c0_i32_0 = arith.constant 0 : i32
    %c0_i32_1 = arith.constant 0 : i32
    return %arg0, %arg1, %c0_i32, %c0_i32_0 : i32, i32, i32, i32
  }
  func.func @transform_1(%arg0: i32, %arg1: i32) -> (i32, i32, i32, i32) {
    %c0_i32 = arith.constant 0 : i32
    %c0_i32_0 = arith.constant 0 : i32
    %c0_i32_1 = arith.constant 0 : i32
    return %arg0, %arg1, %c0_i32, %c0_i32_0 : i32, i32, i32, i32
  }
  func.func @transform_2(%arg0: i32, %arg1: i32) -> (i32, i32, i32, i32) {
    %c0_i32 = arith.constant 0 : i32
    %c0_i32_0 = arith.constant 0 : i32
    %c0_i32_1 = arith.constant 0 : i32
    return %arg0, %arg1, %c0_i32, %c0_i32_0 : i32, i32, i32, i32
  }
  func.func @transform_3(%arg0: i32, %arg1: i32) -> (i32, i32, i32, i32) {
    %c0_i32 = arith.constant 0 : i32
    %c0_i32_0 = arith.constant 0 : i32
    %c0_i32_1 = arith.constant 0 : i32
    %c0_i32_2 = arith.constant 0 : i32
    return %arg0, %c0_i32, %c0_i32_0, %c0_i32_1 : i32, i32, i32, i32
  }
  func.func @transform_4(%arg0: i32, %arg1: i32) -> (i32, i32, i32, i32) {
    %c0_i32 = arith.constant 0 : i32
    %c0_i32_0 = arith.constant 0 : i32
    %c0_i32_1 = arith.constant 0 : i32
    return %arg0, %arg1, %c0_i32, %c0_i32_0 : i32, i32, i32, i32
  }
  func.func @transform_5(%arg0: i32, %arg1: i32) -> (i32, i32, i32, i32) {
    %c0_i32 = arith.constant 0 : i32
    %c0_i32_0 = arith.constant 0 : i32
    %c0_i32_1 = arith.constant 0 : i32
    return %arg0, %arg1, %c0_i32, %c0_i32_0 : i32, i32, i32, i32
  }
}

</mosaic_0001>

<llo_original>
// kernel: tpu_custom_call.1
$region0: #{tpu_custom_call.1}
  #allocation0 [shape = 'u32[]', space=smem, size = 0x4, offset = 0x4, fixed_abs, tag = 'smem constant byte address 0x4 - core index']
  #allocation1 [shape = 'u32[144,128]{1,0:T(1,128)}', space=vmem, size = 0x12000, scoped, tag = 'internal scratch']
  %s0 = inlined_call_operand.hbm [shape: f32[2,4,128,128], index: 0, kind: input, shape index: {}]
  %s1 = inlined_call_operand.hbm [shape: f32[2,4,128,128], index: 1, kind: input, shape index: {}]
  %s2 = inlined_call_operand.hbm [shape: f32[2,4,128,128], index: 2, kind: input, shape index: {}]
  %s3 = inlined_call_operand.hbm [shape: f32[2,1,128,128], index: 3, kind: input, shape index: {}]
  %s4 = inlined_call_operand.hbm [shape: f32[2,4,128,128], index: 4, kind: input, shape index: {}]
  %s5 = inlined_call_operand.hbm [shape: f32[2,4,128,128], index: 5, kind: output, shape index: {}]
  %s6 = sld [smem:[#allocation0]]
  $region73: #{tpu_custom_call.1} parent=0
    _
  %s8 = ssub.s32 1, %s6
  %s9 = scalar_select 0, %s8, %s6
  $region1: #{tpu_custom_call.1} parent=0
    #allocation2 [shape = 'u8[524288]{0}', space=vmem, size = 0x80000, scoped, tag = 'input window, operand 0']
    #allocation3 [shape = 's32[2]{0}', space=sflag, size = 0x8, scoped, tag = 'scoped memory for tpu_custom_call.1']
    #allocation4 [shape = 's32[2]{0}', space=sflag, size = 0x8, scoped, tag = 'scoped memory for tpu_custom_call.1']
    #allocation5 [shape = 'u8[524288]{0}', space=vmem, size = 0x80000, scoped, tag = 'input window, operand 1']
    #allocation6 [shape = 's32[2]{0}', space=sflag, size = 0x8, scoped, tag = 'scoped memory for tpu_custom_call.1']
    #allocation7 [shape = 'u8[524288]{0}', space=vmem, size = 0x80000, scoped, tag = 'input window, operand 2']
    #allocation8 [shape = 'u8[131072]{0}', space=vmem, size = 0x20000, scoped, tag = 'input window, operand 3']
    #allocation9 [shape = 's32[2]{0}', space=sflag, size = 0x8, scoped, tag = 'scoped memory for tpu_custom_call.1']
    #allocation10 [shape = 'u8[524288]{0}', space=vmem, size = 0x80000, scoped, tag = 'input window, operand 4']
    #allocation11 [shape = 'u8[524288]{0}', space=vmem, size = 0x80000, scoped, tag = 'output window, operand 0']
    %10 = vsyncpa [#allocation3], 0
    %s11 = scalar_lea.sflag [#allocation3], 1
    %12 = vsyncpa %s11, 0
    %13 = vsyncpa [#allocation6], 0
    %s14 = scalar_lea.sflag [#allocation6], 1
    %15 = vsyncpa %s14, 0
    %16 = vsyncpa [#allocation9], 0
    %s17 = scalar_lea.sflag [#allocation9], 1
    %18 = vsyncpa %s17, 0
    %19 = vsyncpa [#allocation4], 0
    %s20 = scalar_lea.sflag [#allocation4], 1
    %21 = vsyncpa %s20, 0
    loop: start=0, step=1, limit=4
    $region2: #{tpu_custom_call.1} parent=1 // loop_pre_header
      _
    $region3: #{tpu_custom_call.1} parent=1 // loop_header
      %s23 = sphi 0, %s27
      %p24 = scmp.ge.s32.totalorder %s23, 4
      %s30 = sphi 0, %s42
      %s31 = sphi 0, %s38
      %s32 = sphi 0, %s30
      %s33 = sphi 0, %s31
      %s34 = sphi 0, %s32
      %s35 = sphi 0, %s33
      %s47 = sphi 0, %s49
      %s50 = sphi 0, %s47
      %s51 = sphi 0, %s50
      %s67 = sphi 0, %s51
      %s75 = sphi 0, %s77
      %s78 = sphi 0, %s75
      %s79 = sphi 0, %s78
      %s95 = sphi 0, %s79
      %s103 = sphi 0, %s105
      %s106 = sphi 0, %s103
      %s107 = sphi 0, %s106
      %s123 = sphi 0, %s107
      %s129 = sphi 0, %s131
      %s132 = sphi 0, %s129
      %s133 = sphi 0, %s132
      %s149 = sphi 0, %s133
      %s157 = sphi 0, %s159
      %s160 = sphi 0, %s157
      %s161 = sphi 0, %s160
      %s177 = sphi 0, %s161
      %s185 = sphi 0, %s187
      %s188 = sphi 0, %s185
      %s189 = sphi 0, %s188
      %s205 = sphi 0, %s189
    $region4: #{tpu_custom_call.1} parent=1 // loop_header_branch
      %26 = sbr.rel (%p24) target = $region8
    $region5: #{tpu_custom_call.1} parent=1 // loop_body
      %s28 = ssub.s32 %s23, 1
      %s29 = ssub.s32 %s23, 2
      %s36 = sadd.s32 1, %s31
      %p37 = scmp.ge.s32.totalorder %s36, 1
      %s38 = scalar_select %p37, 0, %s36
      %s39 = sadd.s32 1, %s30
      %s40 = scalar_select %p37, %s39, %s30
      %p41 = scmp.ge.s32.totalorder %s40, 2
      %s42 = scalar_select %p41, 0, %s40
      %s43 = ssub.s32 %s30, %s42
      %s44 = ssub.s32 %s31, %s38
      %s45 = sor.u32 %s43, %s44
      %p46 = scmp.eq.s32.totalorder %s45, 0
      %s48 = sadd.s32 %s47, 1
      %s49 = scalar_select %p46, %s47, %s48
      %p52 = pneg %p46
      %p53 = scmp.eq.s32.totalorder %s23, 1
      %p54 = por %p52, %p53
      %p55 = scmp.ne.s32.totalorder %s47, %s50
      %p56 = scmp.eq.s32.totalorder %s23, 0
      %p57 = por %p55, %p56
      %p58 = scmp.ne.s32.totalorder %s47, %s50
      %p59 = scmp.eq.s32.totalorder %s28, 1
      %p60 = por %p58, %p59
      %p61 = scmp.ne.s32.totalorder %s50, %s51
      %p62 = scmp.eq.s32.totalorder %s28, 0
      %p63 = por %p61, %p62
      %p64 = scmp.ne.s32.totalorder %s50, %s51
      %p65 = scmp.eq.s32.totalorder %s29, 1
      %p66 = por %p64, %p65
      %p68 = scmp.ne.s32.totalorder %s51, %s67
      %p69 = scmp.eq.s32.totalorder %s29, 0
      %p70 = por %p68, %p69
      %s71 = ssub.s32 %s30, %s42
      %s72 = ssub.s32 %s31, %s38
      %s73 = sor.u32 %s71, %s72
      %p74 = scmp.eq.s32.totalorder %s73, 0
      %s76 = sadd.s32 %s75, 1
      %s77 = scalar_select %p74, %s75, %s76
      %p80 = pneg %p74
      %p81 = scmp.eq.s32.totalorder %s23, 1
      %p82 = por %p80, %p81
      %p83 = scmp.ne.s32.totalorder %s75, %s78
      %p84 = scmp.eq.s32.totalorder %s23, 0
      %p85 = por %p83, %p84
      %p86 = scmp.ne.s32.totalorder %s75, %s78
      %p87 = scmp.eq.s32.totalorder %s28, 1
      %p88 = por %p86, %p87
      %p89 = scmp.ne.s32.totalorder %s78, %s79
      %p90 = scmp.eq.s32.totalorder %s28, 0
      %p91 = por %p89, %p90
      %p92 = scmp.ne.s32.totalorder %s78, %s79
      %p93 = scmp.eq.s32.totalorder %s29, 1
      %p94 = por %p92, %p93
      %p96 = scmp.ne.s32.totalorder %s79, %s95
      %p97 = scmp.eq.s32.totalorder %s29, 0
      %p98 = por %p96, %p97
      %s99 = ssub.s32 %s30, %s42
      %s100 = ssub.s32 %s31, %s38
      %s101 = sor.u32 %s99, %s100
      %p102 = scmp.eq.s32.totalorder %s101, 0
      %s104 = sadd.s32 %s103, 1
      %s105 = scalar_select %p102, %s103, %s104
      %p108 = pneg %p102
      %p109 = scmp.eq.s32.totalorder %s23, 1
      %p110 = por %p108, %p109
      %p111 = scmp.ne.s32.totalorder %s103, %s106
      %p112 = scmp.eq.s32.totalorder %s23, 0
      %p113 = por %p111, %p112
      %p114 = scmp.ne.s32.totalorder %s103, %s106
      %p115 = scmp.eq.s32.totalorder %s28, 1
      %p116 = por %p114, %p115
      %p117 = scmp.ne.s32.totalorder %s106, %s107
      %p118 = scmp.eq.s32.totalorder %s28, 0
      %p119 = por %p117, %p118
      %p120 = scmp.ne.s32.totalorder %s106, %s107
      %p121 = scmp.eq.s32.totalorder %s29, 1
      %p122 = por %p120, %p121
      %p124 = scmp.ne.s32.totalorder %s107, %s123
      %p125 = scmp.eq.s32.totalorder %s29, 0
      %p126 = por %p124, %p125
      %s127 = ssub.s32 %s30, %s42
      %p128 = scmp.eq.s32.totalorder %s127, 0
      %s130 = sadd.s32 %s129, 1
      %s131 = scalar_select %p128, %s129, %s130
      %p134 = pneg %p128
      %p135 = scmp.eq.s32.totalorder %s23, 1
      %p136 = por %p134, %p135
      %p137 = scmp.ne.s32.totalorder %s129, %s132
      %p138 = scmp.eq.s32.totalorder %s23, 0
      %p139 = por %p137, %p138
      %p140 = scmp.ne.s32.totalorder %s129, %s132
      %p141 = scmp.eq.s32.totalorder %s28, 1
      %p142 = por %p140, %p141
      %p143 = scmp.ne.s32.totalorder %s132, %s133
      %p144 = scmp.eq.s32.totalorder %s28, 0
      %p145 = por %p143, %p144
      %p146 = scmp.ne.s32.totalorder %s132, %s133
      %p147 = scmp.eq.s32.totalorder %s29, 1
      %p148 = por %p146, %p147
      %p150 = scmp.ne.s32.totalorder %s133, %s149
      %p151 = scmp.eq.s32.totalorder %s29, 0
      %p152 = por %p150, %p151
      %s153 = ssub.s32 %s30, %s42
      %s154 = ssub.s32 %s31, %s38
      %s155 = sor.u32 %s153, %s154
      %p156 = scmp.eq.s32.totalorder %s155, 0
      %s158 = sadd.s32 %s157, 1
      %s159 = scalar_select %p156, %s157, %s158
      %p162 = pneg %p156
      %p163 = scmp.eq.s32.totalorder %s23, 1
      %p164 = por %p162, %p163
      %p165 = scmp.ne.s32.totalorder %s157, %s160
      %p166 = scmp.eq.s32.totalorder %s23, 0
      %p167 = por %p165, %p166
      %p168 = scmp.ne.s32.totalorder %s157, %s160
      %p169 = scmp.eq.s32.totalorder %s28, 1
      %p170 = por %p168, %p169
      %p171 = scmp.ne.s32.totalorder %s160, %s161
      %p172 = scmp.eq.s32.totalorder %s28, 0
      %p173 = por %p171, %p172
      %p174 = scmp.ne.s32.totalorder %s160, %s161
      %p175 = scmp.eq.s32.totalorder %s29, 1
      %p176 = por %p174, %p175
      %p178 = scmp.ne.s32.totalorder %s161, %s177
      %p179 = scmp.eq.s32.totalorder %s29, 0
      %p180 = por %p178, %p179
      %s181 = ssub.s32 %s30, %s42
      %s182 = ssub.s32 %s31, %s38
      %s183 = sor.u32 %s181, %s182
      %p184 = scmp.eq.s32.totalorder %s183, 0
      %s186 = sadd.s32 %s185, 1
      %s187 = scalar_select %p184, %s185, %s186
      %p190 = pneg %p184
      %p191 = scmp.eq.s32.totalorder %s23, 1
      %p192 = por %p190, %p191
      %p193 = scmp.ne.s32.totalorder %s185, %s188
      %p194 = scmp.eq.s32.totalorder %s23, 0
      %p195 = por %p193, %p194
      %p196 = scmp.ne.s32.totalorder %s185, %s188
      %p197 = scmp.eq.s32.totalorder %s28, 1
      %p198 = por %p196, %p197
      %p199 = scmp.ne.s32.totalorder %s188, %s189
      %p200 = scmp.eq.s32.totalorder %s28, 0
      %p201 = por %p199, %p200
      %p202 = scmp.ne.s32.totalorder %s188, %s189
      %p203 = scmp.eq.s32.totalorder %s29, 1
      %p204 = por %p202, %p203
      %p206 = scmp.ne.s32.totalorder %s189, %s205
      %p207 = scmp.eq.s32.totalorder %s29, 0
      %p208 = por %p206, %p207
      %p209 = scmp.le.s32.totalorder 1, %s23
      %p210 = scmp.lt.s32.totalorder %s23, 3
      %p211 = pnand %p209, %p210
      %p212 = pneg %p211
      // Predicated region
      $region9: #{tpu_custom_call.1} parent=5 // pred_check
        _
      $region10: #{tpu_custom_call.1} parent=5 // pred_check_branch
        %214 = sbr.rel (%p211) target = $region12
      $region11: #{tpu_custom_call.1} parent=5 // pred_region
        %s215 = ssub.s32 %s23, 1
      $region12: #{tpu_custom_call.1} parent=5 // pred_fallthru
        _
      %p216 = scmp.lt.s32.totalorder %s23, 2
      // Predicated region
      $region13: #{tpu_custom_call.1} parent=5 // pred_check
        %p217 = pneg %p216
      $region14: #{tpu_custom_call.1} parent=5 // pred_check_branch
        %219 = sbr.rel (%p217) target = $region16
      $region15: #{tpu_custom_call.1} parent=5 // pred_region
        // Predicated region
        $region17: #{tpu_custom_call.1} parent=15 // pred_check
          %p220 = pneg %p57
        $region18: #{tpu_custom_call.1} parent=15 // pred_check_branch
          %222 = sbr.rel (%p220) target = $region20
        $region19: #{tpu_custom_call.1} parent=15 // pred_region
          %s223 = sand.u32 %s47, 1
          %s224 = scalar_lea.sflag [#allocation3], %s223
          %s225 = sand.u32 %s47, 1
          %s226 = smul.addr %s225, 512
          %s227 = scalar_lea.vmem [#allocation2], %s226
          %s228 = smul.u32 4, %s31
          %s230 = ssub.s32 8192, 8192
          %231 = vsyncadd %s224, %s230
          %s232 = smul.addr %s228, 16
          %s233 = smul.addr %s30, 64
          %s234 = sadd.s32 %s232, %s233
          %s235 = smul.addr %s234, 128
          %s236 = scalar_lea.hbm %s0, %s235
          %s237 = sshll.u32 %s227, 4
          %s238 = int_to_ptr.vmem [resolvable:$true] %s237
          %243 = dma.hbm_to_vmem [thread:$0]  %s236, 8192, %s238, %s224, 128, 128, 8
        $region20: #{tpu_custom_call.1} parent=15 // pred_fallthru
          _
        // Predicated region
        $region21: #{tpu_custom_call.1} parent=15 // pred_check
          %p244 = pneg %p85
        $region22: #{tpu_custom_call.1} parent=15 // pred_check_branch
          %246 = sbr.rel (%p244) target = $region24
        $region23: #{tpu_custom_call.1} parent=15 // pred_region
          %s247 = sand.u32 %s23, 1
          %s248 = scalar_lea.sflag [#allocation6], %s247
          %s249 = sand.u32 %s75, 1
          %s250 = smul.addr %s249, 512
          %s251 = scalar_lea.vmem [#allocation5], %s250
          %s252 = smul.u32 4, %s31
          %s254 = ssub.s32 8192, 8192
          %255 = vsyncadd %s248, %s254
          %s256 = smul.addr %s252, 16
          %s257 = smul.addr %s30, 64
          %s258 = sadd.s32 %s256, %s257
          %s259 = smul.addr %s258, 128
          %s260 = scalar_lea.hbm %s1, %s259
          %s261 = sshll.u32 %s251, 4
          %s262 = int_to_ptr.vmem [resolvable:$true] %s261
          %267 = dma.hbm_to_vmem [thread:$0]  %s260, 8192, %s262, %s248, 128, 128, 8
        $region24: #{tpu_custom_call.1} parent=15 // pred_fallthru
          _
        // Predicated region
        $region25: #{tpu_custom_call.1} parent=15 // pred_check
          %p268 = pneg %p113
        $region26: #{tpu_custom_call.1} parent=15 // pred_check_branch
          %270 = sbr.rel (%p268) target = $region28
        $region27: #{tpu_custom_call.1} parent=15 // pred_region
          %s271 = sand.u32 %s23, 1
          %s272 = scalar_lea.sflag [#allocation6], %s271
          %s273 = sand.u32 %s103, 1
          %s274 = smul.addr %s273, 512
          %s275 = scalar_lea.vmem [#allocation7], %s274
          %s276 = smul.u32 4, %s31
          %s278 = ssub.s32 8192, 8192
          %279 = vsyncadd %s272, %s278
          %s280 = smul.addr %s276, 16
          %s281 = smul.addr %s30, 64
          %s282 = sadd.s32 %s280, %s281
          %s283 = smul.addr %s282, 128
          %s284 = scalar_lea.hbm %s2, %s283
          %s285 = sshll.u32 %s275, 4
          %s286 = int_to_ptr.vmem [resolvable:$true] %s285
          %291 = dma.hbm_to_vmem [thread:$0]  %s284, 8192, %s286, %s272, 128, 128, 8
        $region28: #{tpu_custom_call.1} parent=15 // pred_fallthru
          _
        // Predicated region
        $region29: #{tpu_custom_call.1} parent=15 // pred_check
          %p292 = pneg %p139
        $region30: #{tpu_custom_call.1} parent=15 // pred_check_branch
          %294 = sbr.rel (%p292) target = $region32
        $region31: #{tpu_custom_call.1} parent=15 // pred_region
          %s295 = sand.u32 %s23, 1
          %s296 = scalar_lea.sflag [#allocation9], %s295
          %s297 = sand.u32 %s129, 1
          %s298 = smul.addr %s297, 128
          %s299 = scalar_lea.vmem [#allocation8], %s298
          %s301 = ssub.s32 2048, 2048
          %302 = vsyncadd %s296, %s301
          %s303 = smul.addr %s30, 16
          %s304 = smul.addr %s303, 128
          %s305 = scalar_lea.hbm %s3, %s304
          %s306 = sshll.u32 %s299, 4
          %s307 = int_to_ptr.vmem [resolvable:$true] %s306
          %312 = dma.hbm_to_vmem [thread:$0]  %s305, 2048, %s307, %s296, 128, 128, 8
        $region32: #{tpu_custom_call.1} parent=15 // pred_fallthru
          _
        // Predicated region
        $region33: #{tpu_custom_call.1} parent=15 // pred_check
          %p313 = pneg %p167
        $region34: #{tpu_custom_call.1} parent=15 // pred_check_branch
          %315 = sbr.rel (%p313) target = $region36
        $region35: #{tpu_custom_call.1} parent=15 // pred_region
          %s316 = sand.u32 %s23, 1
          %s317 = scalar_lea.sflag [#allocation9], %s316
          %s318 = sand.u32 %s157, 1
          %s319 = smul.addr %s318, 512
          %s320 = scalar_lea.vmem [#allocation10], %s319
          %s321 = smul.u32 4, %s31
          %s323 = ssub.s32 8192, 8192
          %324 = vsyncadd %s317, %s323
          %s325 = smul.addr %s321, 16
          %s326 = smul.addr %s30, 64
          %s327 = sadd.s32 %s325, %s326
          %s328 = smul.addr %s327, 128
          %s329 = scalar_lea.hbm %s4, %s328
          %s330 = sshll.u32 %s320, 4
          %s331 = int_to_ptr.vmem [resolvable:$true] %s330
          %336 = dma.hbm_to_vmem [thread:$0]  %s329, 8192, %s331, %s317, 128, 128, 8
        $region36: #{tpu_custom_call.1} parent=15 // pred_fallthru
          _
      $region16: #{tpu_custom_call.1} parent=5 // pred_fallthru
        _
      %p337 = scmp.le.s32.totalorder 1, %s23
      %p338 = scmp.lt.s32.totalorder %s23, 3
      %p339 = pnand %p337, %p338
      %p340 = pneg %p339
      // Predicated region
      $region37: #{tpu_custom_call.1} parent=5 // pred_check
        _
      $region38: #{tpu_custom_call.1} parent=5 // pred_check_branch
        %342 = sbr.rel (%p339) target = $region40
      $region39: #{tpu_custom_call.1} parent=5 // pred_region
        %s343 = ssub.s32 %s23, 1
        %s344 = sand.u32 %s50, 1
        %s345 = scalar_lea.sflag [#allocation3], %s344
        %s346 = sand.u32 %s50, 1
        %s347 = smul.addr %s346, 512
        %s348 = scalar_lea.vmem [#allocation2], %s347
        // Predicated region
        $region41: #{tpu_custom_call.1} parent=39 // pred_check
          %p349 = pneg %p63
        $region42: #{tpu_custom_call.1} parent=39 // pred_check_branch
          %351 = sbr.rel (%p349) target = $region44
        $region43: #{tpu_custom_call.1} parent=39 // pred_region
          %352 = dma.done %s345, 8192
        $region44: #{tpu_custom_call.1} parent=39 // pred_fallthru
          _
        %s353 = sand.u32 %s28, 1
        %s354 = scalar_lea.sflag [#allocation6], %s353
        %s355 = sand.u32 %s78, 1
        %s356 = smul.addr %s355, 512
        %s357 = scalar_lea.vmem [#allocation5], %s356
        // Predicated region
        $region45: #{tpu_custom_call.1} parent=39 // pred_check
          %p358 = pneg %p91
        $region46: #{tpu_custom_call.1} parent=39 // pred_check_branch
          %360 = sbr.rel (%p358) target = $region48
        $region47: #{tpu_custom_call.1} parent=39 // pred_region
          %361 = dma.done %s354, 8192
        $region48: #{tpu_custom_call.1} parent=39 // pred_fallthru
          _
        %s362 = sand.u32 %s28, 1
        %s363 = scalar_lea.sflag [#allocation6], %s362
        %s364 = sand.u32 %s106, 1
        %s365 = smul.addr %s364, 512
        %s366 = scalar_lea.vmem [#allocation7], %s365
        // Predicated region
        $region49: #{tpu_custom_call.1} parent=39 // pred_check
          %p367 = pneg %p119
        $region50: #{tpu_custom_call.1} parent=39 // pred_check_branch
          %369 = sbr.rel (%p367) target = $region52
        $region51: #{tpu_custom_call.1} parent=39 // pred_region
          %370 = dma.done %s363, 8192
        $region52: #{tpu_custom_call.1} parent=39 // pred_fallthru
          _
        %s371 = sand.u32 %s28, 1
        %s372 = scalar_lea.sflag [#allocation9], %s371
        %s373 = sand.u32 %s132, 1
        %s374 = smul.addr %s373, 128
        %s375 = scalar_lea.vmem [#allocation8], %s374
        // Predicated region
        $region53: #{tpu_custom_call.1} parent=39 // pred_check
          %p376 = pneg %p145
        $region54: #{tpu_custom_call.1} parent=39 // pred_check_branch
          %378 = sbr.rel (%p376) target = $region56
        $region55: #{tpu_custom_call.1} parent=39 // pred_region
          %379 = dma.done %s372, 2048
        $region56: #{tpu_custom_call.1} parent=39 // pred_fallthru
          _
        %s380 = sand.u32 %s28, 1
        %s381 = scalar_lea.sflag [#allocation9], %s380
        %s382 = sand.u32 %s160, 1
        %s383 = smul.addr %s382, 512
        %s384 = scalar_lea.vmem [#allocation10], %s383
        // Predicated region
        $region57: #{tpu_custom_call.1} parent=39 // pred_check
          %p385 = pneg %p173
        $region58: #{tpu_custom_call.1} parent=39 // pred_check_branch
          %387 = sbr.rel (%p385) target = $region60
        $region59: #{tpu_custom_call.1} parent=39 // pred_region
          %388 = dma.done %s381, 8192
        $region60: #{tpu_custom_call.1} parent=39 // pred_fallthru
          _
        %s389 = sand.u32 %s50, 1
        %s390 = scalar_lea.sflag [#allocation3], %s389
        %s391 = sand.u32 %s50, 1
        %s392 = smul.addr %s391, 512
        %s393 = scalar_lea.vmem [#allocation2], %s392
        %p394 = pneg %p63
        %p395 = pneg %p60
        %s396 = sand.u32 %s28, 1
        %s397 = scalar_lea.sflag [#allocation6], %s396
        %s398 = sand.u32 %s78, 1
        %s399 = smul.addr %s398, 512
        %s400 = scalar_lea.vmem [#allocation5], %s399
        %p401 = pneg %p91
        %p402 = pneg %p88
        %s403 = sand.u32 %s28, 1
        %s404 = scalar_lea.sflag [#allocation6], %s403
        %s405 = sand.u32 %s106, 1
        %s406 = smul.addr %s405, 512
        %s407 = scalar_lea.vmem [#allocation7], %s406
        %p408 = pneg %p119
        %p409 = pneg %p116
        %s410 = sand.u32 %s28, 1
        %s411 = scalar_lea.sflag [#allocation9], %s410
        %s412 = sand.u32 %s132, 1
        %s413 = smul.addr %s412, 128
        %s414 = scalar_lea.vmem [#allocation8], %s413
        %p415 = pneg %p145
        %p416 = pneg %p142
        %s417 = sand.u32 %s28, 1
        %s418 = scalar_lea.sflag [#allocation9], %s417
        %s419 = sand.u32 %s160, 1
        %s420 = smul.addr %s419, 512
        %s421 = scalar_lea.vmem [#allocation10], %s420
        %p422 = pneg %p173
        %p423 = pneg %p170
        %p424 = pneg %p201
        %p425 = pneg %p198
        %s426 = sand.u32 %s188, 1
        %s427 = scalar_lea.sflag [#allocation4], %s426
        %s428 = sand.u32 %s188, 1
        %s429 = smul.addr %s428, 512
        %s430 = scalar_lea.vmem [#allocation11], %s429
        %s431 = smul.u32 4, %s33
        %s432 = smul.u32 4, %s33
        %s433 = smul.u32 4, %s33
        %s434 = smul.u32 4, %s33
        %s435 = smul.u32 4, %s33
        %v437 = vld [vmem:[%s348] sm:$0xff]
        %v438 = vld [vmem:[%s348 + $0x8] sm:$0xff]
        %v439 = vld [vmem:[%s348 + $0x10] sm:$0xff]
        %v440 = vld [vmem:[%s348 + $0x18] sm:$0xff]
        %v441 = vld [vmem:[%s348 + $0x20] sm:$0xff]
        %v442 = vld [vmem:[%s348 + $0x28] sm:$0xff]
        %v443 = vld [vmem:[%s348 + $0x30] sm:$0xff]
        %v444 = vld [vmem:[%s348 + $0x38] sm:$0xff]
        %v445 = vld [vmem:[%s348 + $0x40] sm:$0xff]
        %v446 = vld [vmem:[%s348 + $0x48] sm:$0xff]
        %v447 = vld [vmem:[%s348 + $0x50] sm:$0xff]
        %v448 = vld [vmem:[%s348 + $0x58] sm:$0xff]
        %v449 = vld [vmem:[%s348 + $0x60] sm:$0xff]
        %v450 = vld [vmem:[%s348 + $0x68] sm:$0xff]
        %v451 = vld [vmem:[%s348 + $0x70] sm:$0xff]
        %v452 = vld [vmem:[%s348 + $0x78] sm:$0xff]
        %v453 = vld [vmem:[%s348 + $0x80] sm:$0xff]
        %v454 = vld [vmem:[%s348 + $0x88] sm:$0xff]
        %v455 = vld [vmem:[%s348 + $0x90] sm:$0xff]
        %v456 = vld [vmem:[%s348 + $0x98] sm:$0xff]
        %v457 = vld [vmem:[%s348 + $0xa0] sm:$0xff]
        %v458 = vld [vmem:[%s348 + $0xa8] sm:$0xff]
        %v459 = vld [vmem:[%s348 + $0xb0] sm:$0xff]
        %v460 = vld [vmem:[%s348 + $0xb8] sm:$0xff]
        %v461 = vld [vmem:[%s348 + $0xc0] sm:$0xff]
        %v462 = vld [vmem:[%s348 + $0xc8] sm:$0xff]
        %v463 = vld [vmem:[%s348 + $0xd0] sm:$0xff]
        %v464 = vld [vmem:[%s348 + $0xd8] sm:$0xff]
        %v465 = vld [vmem:[%s348 + $0xe0] sm:$0xff]
        %v466 = vld [vmem:[%s348 + $0xe8] sm:$0xff]
        %v467 = vld [vmem:[%s348 + $0xf0] sm:$0xff]
        %v468 = vld [vmem:[%s348 + $0xf8] sm:$0xff]
        %v469 = vld [vmem:[%s348 + $0x100] sm:$0xff]
        %v470 = vld [vmem:[%s348 + $0x108] sm:$0xff]
        %v471 = vld [vmem:[%s348 + $0x110] sm:$0xff]
        %v472 = vld [vmem:[%s348 + $0x118] sm:$0xff]
        %v473 = vld [vmem:[%s348 + $0x120] sm:$0xff]
        %v474 = vld [vmem:[%s348 + $0x128] sm:$0xff]
        %v475 = vld [vmem:[%s348 + $0x130] sm:$0xff]
        %v476 = vld [vmem:[%s348 + $0x138] sm:$0xff]
        %v477 = vld [vmem:[%s348 + $0x140] sm:$0xff]
        %v478 = vld [vmem:[%s348 + $0x148] sm:$0xff]
        %v479 = vld [vmem:[%s348 + $0x150] sm:$0xff]
        %v480 = vld [vmem:[%s348 + $0x158] sm:$0xff]
        %v481 = vld [vmem:[%s348 + $0x160] sm:$0xff]
        %v482 = vld [vmem:[%s348 + $0x168] sm:$0xff]
        %v483 = vld [vmem:[%s348 + $0x170] sm:$0xff]
        %v484 = vld [vmem:[%s348 + $0x178] sm:$0xff]
        %v485 = vld [vmem:[%s348 + $0x180] sm:$0xff]
        %v486 = vld [vmem:[%s348 + $0x188] sm:$0xff]
        %v487 = vld [vmem:[%s348 + $0x190] sm:$0xff]
        %v488 = vld [vmem:[%s348 + $0x198] sm:$0xff]
        %v489 = vld [vmem:[%s348 + $0x1a0] sm:$0xff]
        %v490 = vld [vmem:[%s348 + $0x1a8] sm:$0xff]
        %v491 = vld [vmem:[%s348 + $0x1b0] sm:$0xff]
        %v492 = vld [vmem:[%s348 + $0x1b8] sm:$0xff]
        %v493 = vld [vmem:[%s348 + $0x1c0] sm:$0xff]
        %v494 = vld [vmem:[%s348 + $0x1c8] sm:$0xff]
        %v495 = vld [vmem:[%s348 + $0x1d0] sm:$0xff]
        %v496 = vld [vmem:[%s348 + $0x1d8] sm:$0xff]
        %v497 = vld [vmem:[%s348 + $0x1e0] sm:$0xff]
        %v498 = vld [vmem:[%s348 + $0x1e8] sm:$0xff]
        %v499 = vld [vmem:[%s348 + $0x1f0] sm:$0xff]
        %v500 = vld [vmem:[%s348 + $0x1f8] sm:$0xff]
        %v501 = vmul.f32 %v437, 0.088388346
        %v502 = vmul.f32 %v438, 0.088388346
        %v503 = vmul.f32 %v439, 0.088388346
        %v504 = vmul.f32 %v440, 0.088388346
        %v505 = vmul.f32 %v441, 0.088388346
        %v506 = vmul.f32 %v442, 0.088388346
        %v507 = vmul.f32 %v443, 0.088388346
        %v508 = vmul.f32 %v444, 0.088388346
        %v509 = vmul.f32 %v445, 0.088388346
        %v510 = vmul.f32 %v446, 0.088388346
        %v511 = vmul.f32 %v447, 0.088388346
        %v512 = vmul.f32 %v448, 0.088388346
        %v513 = vmul.f32 %v449, 0.088388346
        %v514 = vmul.f32 %v450, 0.088388346
        %v515 = vmul.f32 %v451, 0.088388346
        %v516 = vmul.f32 %v452, 0.088388346
        %v517 = vmul.f32 %v453, 0.088388346
        %v518 = vmul.f32 %v454, 0.088388346
        %v519 = vmul.f32 %v455, 0.088388346
        %v520 = vmul.f32 %v456, 0.088388346
        %v521 = vmul.f32 %v457, 0.088388346
        %v522 = vmul.f32 %v458, 0.088388346
        %v523 = vmul.f32 %v459, 0.088388346
        %v524 = vmul.f32 %v460, 0.088388346
        %v525 = vmul.f32 %v461, 0.088388346
        %v526 = vmul.f32 %v462, 0.088388346
        %v527 = vmul.f32 %v463, 0.088388346
        %v528 = vmul.f32 %v464, 0.088388346
        %v529 = vmul.f32 %v465, 0.088388346
        %v530 = vmul.f32 %v466, 0.088388346
        %v531 = vmul.f32 %v467, 0.088388346
        %v532 = vmul.f32 %v468, 0.088388346
        %v533 = vmul.f32 %v469, 0.088388346
        %v534 = vmul.f32 %v470, 0.088388346
        %v535 = vmul.f32 %v471, 0.088388346
        %v536 = vmul.f32 %v472, 0.088388346
        %v537 = vmul.f32 %v473, 0.088388346
        %v538 = vmul.f32 %v474, 0.088388346
        %v539 = vmul.f32 %v475, 0.088388346
        %v540 = vmul.f32 %v476, 0.088388346
        %v541 = vmul.f32 %v477, 0.088388346
        %v542 = vmul.f32 %v478, 0.088388346
        %v543 = vmul.f32 %v479, 0.088388346
        %v544 = vmul.f32 %v480, 0.088388346
        %v545 = vmul.f32 %v481, 0.088388346
        %v546 = vmul.f32 %v482, 0.088388346
        %v547 = vmul.f32 %v483, 0.088388346
        %v548 = vmul.f32 %v484, 0.088388346
        %v549 = vmul.f32 %v485, 0.088388346
        %v550 = vmul.f32 %v486, 0.088388346
        %v551 = vmul.f32 %v487, 0.088388346
        %v552 = vmul.f32 %v488, 0.088388346
        %v553 = vmul.f32 %v489, 0.088388346
        %v554 = vmul.f32 %v490, 0.088388346
        %v555 = vmul.f32 %v491, 0.088388346
        %v556 = vmul.f32 %v492, 0.088388346
        %v557 = vmul.f32 %v493, 0.088388346
        %v558 = vmul.f32 %v494, 0.088388346
        %v559 = vmul.f32 %v495, 0.088388346
        %v560 = vmul.f32 %v496, 0.088388346
        %v561 = vmul.f32 %v497, 0.088388346
        %v562 = vmul.f32 %v498, 0.088388346
        %v563 = vmul.f32 %v499, 0.088388346
        %v564 = vmul.f32 %v500, 0.088388346
        %v565 = vpack.c.bf16 %v502, %v501
        %v566 = vpack.c.bf16 %v504, %v503
        %v567 = vpack.c.bf16 %v506, %v505
        %v568 = vpack.c.bf16 %v508, %v507
        %v569 = vpack.c.bf16 %v510, %v509
        %v570 = vpack.c.bf16 %v512, %v511
        %v571 = vpack.c.bf16 %v514, %v513
        %v572 = vpack.c.bf16 %v516, %v515
        %v573 = vpack.c.bf16 %v518, %v517
        %v574 = vpack.c.bf16 %v520, %v519
        %v575 = vpack.c.bf16 %v522, %v521
        %v576 = vpack.c.bf16 %v524, %v523
        %v577 = vpack.c.bf16 %v526, %v525
        %v578 = vpack.c.bf16 %v528, %v527
        %v579 = vpack.c.bf16 %v530, %v529
        %v580 = vpack.c.bf16 %v532, %v531
        %v581 = vpack.c.bf16 %v534, %v533
        %v582 = vpack.c.bf16 %v536, %v535
        %v583 = vpack.c.bf16 %v538, %v537
        %v584 = vpack.c.bf16 %v540, %v539
        %v585 = vpack.c.bf16 %v542, %v541
        %v586 = vpack.c.bf16 %v544, %v543
        %v587 = vpack.c.bf16 %v546, %v545
        %v588 = vpack.c.bf16 %v548, %v547
        %v589 = vpack.c.bf16 %v550, %v549
        %v590 = vpack.c.bf16 %v552, %v551
        %v591 = vpack.c.bf16 %v554, %v553
        %v592 = vpack.c.bf16 %v556, %v555
        %v593 = vpack.c.bf16 %v558, %v557
        %v594 = vpack.c.bf16 %v560, %v559
        %v595 = vpack.c.bf16 %v562, %v561
        %v596 = vpack.c.bf16 %v564, %v563
        %v597 = vld [vmem:[%s357] sm:$0xff]
        %v598 = vld [vmem:[%s357 + $0x8] sm:$0xff]
        %v599 = vld [vmem:[%s357 + $0x10] sm:$0xff]
        %v600 = vld [vmem:[%s357 + $0x18] sm:$0xff]
        %v601 = vld [vmem:[%s357 + $0x20] sm:$0xff]
        %v602 = vld [vmem:[%s357 + $0x28] sm:$0xff]
        %v603 = vld [vmem:[%s357 + $0x30] sm:$0xff]
        %v604 = vld [vmem:[%s357 + $0x38] sm:$0xff]
        %v605 = vld [vmem:[%s357 + $0x40] sm:$0xff]
        %v606 = vld [vmem:[%s357 + $0x48] sm:$0xff]
        %v607 = vld [vmem:[%s357 + $0x50] sm:$0xff]
        %v608 = vld [vmem:[%s357 + $0x58] sm:$0xff]
        %v609 = vld [vmem:[%s357 + $0x60] sm:$0xff]
        %v610 = vld [vmem:[%s357 + $0x68] sm:$0xff]
        %v611 = vld [vmem:[%s357 + $0x70] sm:$0xff]
        %v612 = vld [vmem:[%s357 + $0x78] sm:$0xff]
        %v613 = vld [vmem:[%s357 + $0x80] sm:$0xff]
        %v614 = vld [vmem:[%s357 + $0x88] sm:$0xff]
        %v615 = vld [vmem:[%s357 + $0x90] sm:$0xff]
        %v616 = vld [vmem:[%s357 + $0x98] sm:$0xff]
        %v617 = vld [vmem:[%s357 + $0xa0] sm:$0xff]
        %v618 = vld [vmem:[%s357 + $0xa8] sm:$0xff]
        %v619 = vld [vmem:[%s357 + $0xb0] sm:$0xff]
        %v620 = vld [vmem:[%s357 + $0xb8] sm:$0xff]
        %v621 = vld [vmem:[%s357 + $0xc0] sm:$0xff]
        %v622 = vld [vmem:[%s357 + $0xc8] sm:$0xff]
        %v623 = vld [vmem:[%s357 + $0xd0] sm:$0xff]
        %v624 = vld [vmem:[%s357 + $0xd8] sm:$0xff]
        %v625 = vld [vmem:[%s357 + $0xe0] sm:$0xff]
        %v626 = vld [vmem:[%s357 + $0xe8] sm:$0xff]
        %v627 = vld [vmem:[%s357 + $0xf0] sm:$0xff]
        %v628 = vld [vmem:[%s357 + $0xf8] sm:$0xff]
        %v629 = vld [vmem:[%s357 + $0x100] sm:$0xff]
        %v630 = vld [vmem:[%s357 + $0x108] sm:$0xff]
        %v631 = vld [vmem:[%s357 + $0x110] sm:$0xff]
        %v632 = vld [vmem:[%s357 + $0x118] sm:$0xff]
        %v633 = vld [vmem:[%s357 + $0x120] sm:$0xff]
        %v634 = vld [vmem:[%s357 + $0x128] sm:$0xff]
        %v635 = vld [vmem:[%s357 + $0x130] sm:$0xff]
        %v636 = vld [vmem:[%s357 + $0x138] sm:$0xff]
        %v637 = vld [vmem:[%s357 + $0x140] sm:$0xff]
        %v638 = vld [vmem:[%s357 + $0x148] sm:$0xff]
        %v639 = vld [vmem:[%s357 + $0x150] sm:$0xff]
        %v640 = vld [vmem:[%s357 + $0x158] sm:$0xff]
        %v641 = vld [vmem:[%s357 + $0x160] sm:$0xff]
        %v642 = vld [vmem:[%s357 + $0x168] sm:$0xff]
        %v643 = vld [vmem:[%s357 + $0x170] sm:$0xff]
        %v644 = vld [vmem:[%s357 + $0x178] sm:$0xff]
        %v645 = vld [vmem:[%s357 + $0x180] sm:$0xff]
        %v646 = vld [vmem:[%s357 + $0x188] sm:$0xff]
        %v647 = vld [vmem:[%s357 + $0x190] sm:$0xff]
        %v648 = vld [vmem:[%s357 + $0x198] sm:$0xff]
        %v649 = vld [vmem:[%s357 + $0x1a0] sm:$0xff]
        %v650 = vld [vmem:[%s357 + $0x1a8] sm:$0xff]
        %v651 = vld [vmem:[%s357 + $0x1b0] sm:$0xff]
        %v652 = vld [vmem:[%s357 + $0x1b8] sm:$0xff]
        %v653 = vld [vmem:[%s357 + $0x1c0] sm:$0xff]
        %v654 = vld [vmem:[%s357 + $0x1c8] sm:$0xff]
        %v655 = vld [vmem:[%s357 + $0x1d0] sm:$0xff]
        %v656 = vld [vmem:[%s357 + $0x1d8] sm:$0xff]
        %v657 = vld [vmem:[%s357 + $0x1e0] sm:$0xff]
        %v658 = vld [vmem:[%s357 + $0x1e8] sm:$0xff]
        %v659 = vld [vmem:[%s357 + $0x1f0] sm:$0xff]
        %v660 = vld [vmem:[%s357 + $0x1f8] sm:$0xff]
        %v661 = vpack.c.bf16 %v598, %v597
        %v662 = vpack.c.bf16 %v600, %v599
        %v663 = vpack.c.bf16 %v602, %v601
        %v664 = vpack.c.bf16 %v604, %v603
        %v665 = vpack.c.bf16 %v606, %v605
        %v666 = vpack.c.bf16 %v608, %v607
        %v667 = vpack.c.bf16 %v610, %v609
        %v668 = vpack.c.bf16 %v612, %v611
        %v669 = vpack.c.bf16 %v614, %v613
        %v670 = vpack.c.bf16 %v616, %v615
        %v671 = vpack.c.bf16 %v618, %v617
        %v672 = vpack.c.bf16 %v620, %v619
        %v673 = vpack.c.bf16 %v622, %v621
        %v674 = vpack.c.bf16 %v624, %v623
        %v675 = vpack.c.bf16 %v626, %v625
        %v676 = vpack.c.bf16 %v628, %v627
        %v677 = vpack.c.bf16 %v630, %v629
        %v678 = vpack.c.bf16 %v632, %v631
        %v679 = vpack.c.bf16 %v634, %v633
        %v680 = vpack.c.bf16 %v636, %v635
        %v681 = vpack.c.bf16 %v638, %v637
        %v682 = vpack.c.bf16 %v640, %v639
        %v683 = vpack.c.bf16 %v642, %v641
        %v684 = vpack.c.bf16 %v644, %v643
        %v685 = vpack.c.bf16 %v646, %v645
        %v686 = vpack.c.bf16 %v648, %v647
        %v687 = vpack.c.bf16 %v650, %v649
        %v688 = vpack.c.bf16 %v652, %v651
        %v689 = vpack.c.bf16 %v654, %v653
        %v690 = vpack.c.bf16 %v656, %v655
        %v691 = vpack.c.bf16 %v658, %v657
        %v692 = vpack.c.bf16 %v660, %v659
        %v693 = vld [vmem:[%s375] sm:$0xff]
        %v694 = vld [vmem:[%s375 + $0x8] sm:$0xff]
        %v695 = vld [vmem:[%s375 + $0x10] sm:$0xff]
        %v696 = vld [vmem:[%s375 + $0x18] sm:$0xff]
        %v697 = vld [vmem:[%s375 + $0x20] sm:$0xff]
        %v698 = vld [vmem:[%s375 + $0x28] sm:$0xff]
        %v699 = vld [vmem:[%s375 + $0x30] sm:$0xff]
        %v700 = vld [vmem:[%s375 + $0x38] sm:$0xff]
        %v701 = vld [vmem:[%s375 + $0x40] sm:$0xff]
        %v702 = vld [vmem:[%s375 + $0x48] sm:$0xff]
        %v703 = vld [vmem:[%s375 + $0x50] sm:$0xff]
        %v704 = vld [vmem:[%s375 + $0x58] sm:$0xff]
        %v705 = vld [vmem:[%s375 + $0x60] sm:$0xff]
        %v706 = vld [vmem:[%s375 + $0x68] sm:$0xff]
        %v707 = vld [vmem:[%s375 + $0x70] sm:$0xff]
        %v708 = vld [vmem:[%s375 + $0x78] sm:$0xff]
        %709 = vmatprep.subr.bf16.mxu0 0
        %710 = vmatpush1.bf16.xpose.msra.mxu0 %v661
        %711 = vmatprep.subr.bf16.mxu0 0
        %712 = vmatpush1.bf16.xpose.msra.mxu0 %v662
        %713 = vmatprep.subr.bf16.mxu0 0
        %714 = vmatpush1.bf16.xpose.msra.mxu0 %v663
        %715 = vmatprep.subr.bf16.mxu0 0
        %716 = vmatpush1.bf16.xpose.msra.mxu0 %v664
        %717 = vmatprep.subr.bf16.mxu0 0
        %718 = vmatpush1.bf16.xpose.msra.mxu0 %v665
        %719 = vmatprep.subr.bf16.mxu0 0
        %720 = vmatpush1.bf16.xpose.msra.mxu0 %v666
        %721 = vmatprep.subr.bf16.mxu0 0
        %722 = vmatpush1.bf16.xpose.msra.mxu0 %v667
        %723 = vmatprep.subr.bf16.mxu0 0
        %724 = vmatpush1.bf16.xpose.msra.mxu0 %v668
        %725 = vmatprep.subr.bf16.mxu0 0
        %726 = vmatpush1.bf16.xpose.msra.mxu0 0
        %727 = vmatprep.subr.bf16.mxu0 0
        %728 = vmatpush1.bf16.xpose.msra.mxu0 0
        %729 = vmatprep.subr.bf16.mxu0 0
        %730 = vmatpush1.bf16.xpose.msra.mxu0 0
        %731 = vmatprep.subr.bf16.mxu0 0
        %732 = vmatpush1.bf16.xpose.msra.mxu0 0
        %733 = vmatprep.subr.bf16.mxu0 0
        %734 = vmatpush1.bf16.xpose.msra.mxu0 0
        %735 = vmatprep.subr.bf16.mxu0 0
        %736 = vmatpush1.bf16.xpose.msra.mxu0 0
        %737 = vmatprep.subr.bf16.mxu0 0
        %738 = vmatpush1.bf16.xpose.msra.mxu0 0
        %739 = vmatprep.subr.bf16.mxu0 0
        %740 = vmatpush1.bf16.xpose.msra.mxu0 0
        %741 = vmatprep.mubr.bf16.mxu0 0
        %742 = vmatmul.mubr.bf16.gmra.mrb[0].mxu0 %v565
        %v743 = vpop.f32.mrb[0].mxu0
        %v744 = vadd.f32 %v693, %v743
        %v745 = vpop.f32.mrb[0].mxu0
        %v746 = vpop.f32.mrb[0].mxu0
        %v747 = vadd.f32 %v694, %v746
        %v748 = vpop.f32.mrb[0].mxu0
        %749 = vmatprep.mubr.bf16.mxu0 0
        %750 = vmatmul.mubr.bf16.gmra.mrb[0].mxu0 %v566
        %v751 = vpop.f32.mrb[0].mxu0
        %v752 = vadd.f32 %v695, %v751
        %v753 = vpop.f32.mrb[0].mxu0
        %v754 = vpop.f32.mrb[0].mxu0
        %v755 = vadd.f32 %v696, %v754
        %v756 = vpop.f32.mrb[0].mxu0
        %757 = vmatprep.mubr.bf16.mxu0 0
        %758 = vmatmul.mubr.bf16.gmra.mrb[0].mxu0 %v567
        %v759 = vpop.f32.mrb[0].mxu0
        %v760 = vadd.f32 %v697, %v759
        %v761 = vpop.f32.mrb[0].mxu0
        %v762 = vpop.f32.mrb[0].mxu0
        %v763 = vadd.f32 %v698, %v762
        %v764 = vpop.f32.mrb[0].mxu0
        %765 = vmatprep.mubr.bf16.mxu0 0
        %766 = vmatmul.mubr.bf16.gmra.mrb[0].mxu0 %v568
        %v767 = vpop.f32.mrb[0].mxu0
        %v768 = vadd.f32 %v699, %v767
        %v769 = vpop.f32.mrb[0].mxu0
        %v770 = vpop.f32.mrb[0].mxu0
        %v771 = vadd.f32 %v700, %v770
        %v772 = vpop.f32.mrb[0].mxu0
        %773 = vmatprep.mubr.bf16.mxu0 0
        %774 = vmatmul.mubr.bf16.gmra.mrb[0].mxu0 %v569
        %v775 = vpop.f32.mrb[0].mxu0
        %v776 = vadd.f32 %v701, %v775
        %v777 = vpop.f32.mrb[0].mxu0
        %v778 = vpop.f32.mrb[0].mxu0
        %v779 = vadd.f32 %v702, %v778
        %v780 = vpop.f32.mrb[0].mxu0
        %781 = vmatprep.mubr.bf16.mxu0 0
        %782 = vmatmul.mubr.bf16.gmra.mrb[0].mxu0 %v570
        %v783 = vpop.f32.mrb[0].mxu0
        %v784 = vadd.f32 %v703, %v783
        %v785 = vpop.f32.mrb[0].mxu0
        %v786 = vpop.f32.mrb[0].mxu0
        %v787 = vadd.f32 %v704, %v786
        %v788 = vpop.f32.mrb[0].mxu0
        %789 = vmatprep.mubr.bf16.mxu0 0
        %790 = vmatmul.mubr.bf16.gmra.mrb[0].mxu0 %v571
        %v791 = vpop.f32.mrb[0].mxu0
        %v792 = vadd.f32 %v705, %v791
        %v793 = vpop.f32.mrb[0].mxu0
        %v794 = vpop.f32.mrb[0].mxu0
        %v795 = vadd.f32 %v706, %v794
        %v796 = vpop.f32.mrb[0].mxu0
        %797 = vmatprep.mubr.bf16.mxu0 0
        %798 = vmatmul.mubr.bf16.gmra.mrb[0].mxu0 %v572
        %v799 = vpop.f32.mrb[0].mxu0
        %v800 = vadd.f32 %v707, %v799
        %v801 = vpop.f32.mrb[0].mxu0
        %v802 = vpop.f32.mrb[0].mxu0
        %v803 = vadd.f32 %v708, %v802
        %v804 = vpop.f32.mrb[0].mxu0
        %805 = vdwg.mxu0
        %806 = vmatprep.subr.bf16.mxu0 0
        %807 = vmatpush1.bf16.xpose.msra.mxu0 %v669
        %808 = vmatprep.subr.bf16.mxu0 0
        %809 = vmatpush1.bf16.xpose.msra.mxu0 %v670
        %810 = vmatprep.subr.bf16.mxu0 0
        %811 = vmatpush1.bf16.xpose.msra.mxu0 %v671
        %812 = vmatprep.subr.bf16.mxu0 0
        %813 = vmatpush1.bf16.xpose.msra.mxu0 %v672
        %814 = vmatprep.subr.bf16.mxu0 0
        %815 = vmatpush1.bf16.xpose.msra.mxu0 %v673
        %816 = vmatprep.subr.bf16.mxu0 0
        %817 = vmatpush1.bf16.xpose.msra.mxu0 %v674
        %818 = vmatprep.subr.bf16.mxu0 0
        %819 = vmatpush1.bf16.xpose.msra.mxu0 %v675
        %820 = vmatprep.subr.bf16.mxu0 0
        %821 = vmatpush1.bf16.xpose.msra.mxu0 %v676
        %822 = vmatprep.subr.bf16.mxu0 0
        %823 = vmatpush1.bf16.xpose.msra.mxu0 0
        %824 = vmatprep.subr.bf16.mxu0 0
        %825 = vmatpush1.bf16.xpose.msra.mxu0 0
        %826 = vmatprep.subr.bf16.mxu0 0
        %827 = vmatpush1.bf16.xpose.msra.mxu0 0
        %828 = vmatprep.subr.bf16.mxu0 0
        %829 = vmatpush1.bf16.xpose.msra.mxu0 0
        %830 = vmatprep.subr.bf16.mxu0 0
        %831 = vmatpush1.bf16.xpose.msra.mxu0 0
        %832 = vmatprep.subr.bf16.mxu0 0
        %833 = vmatpush1.bf16.xpose.msra.mxu0 0
        %834 = vmatprep.subr.bf16.mxu0 0
        %835 = vmatpush1.bf16.xpose.msra.mxu0 0
        %836 = vmatprep.subr.bf16.mxu0 0
        %837 = vmatpush1.bf16.xpose.msra.mxu0 0
        %838 = vmatprep.mubr.bf16.mxu0 0
        %839 = vmatmul.mubr.bf16.gmra.mrb[0].mxu0 %v573
        %v840 = vpop.f32.mrb[0].mxu0
        %v841 = vadd.f32 %v693, %v840
        %v842 = vpop.f32.mrb[0].mxu0
        %v843 = vpop.f32.mrb[0].mxu0
        %v844 = vadd.f32 %v694, %v843
        %v845 = vpop.f32.mrb[0].mxu0
        %846 = vmatprep.mubr.bf16.mxu0 0
        %847 = vmatmul.mubr.bf16.gmra.mrb[0].mxu0 %v574
        %v848 = vpop.f32.mrb[0].mxu0
        %v849 = vadd.f32 %v695, %v848
        %v850 = vpop.f32.mrb[0].mxu0
        %v851 = vpop.f32.mrb[0].mxu0
        %v852 = vadd.f32 %v696, %v851
        %v853 = vpop.f32.mrb[0].mxu0
        %854 = vmatprep.mubr.bf16.mxu0 0
        %855 = vmatmul.mubr.bf16.gmra.mrb[0].mxu0 %v575
        %v856 = vpop.f32.mrb[0].mxu0
        %v857 = vadd.f32 %v697, %v856
        %v858 = vpop.f32.mrb[0].mxu0
        %v859 = vpop.f32.mrb[0].mxu0
        %v860 = vadd.f32 %v698, %v859
        %v861 = vpop.f32.mrb[0].mxu0
        %862 = vmatprep.mubr.bf16.mxu0 0
        %863 = vmatmul.mubr.bf16.gmra.mrb[0].mxu0 %v576
        %v864 = vpop.f32.mrb[0].mxu0
        %v865 = vadd.f32 %v699, %v864
        %v866 = vpop.f32.mrb[0].mxu0
        %v867 = vpop.f32.mrb[0].mxu0
        %v868 = vadd.f32 %v700, %v867
        %v869 = vpop.f32.mrb[0].mxu0
        %870 = vmatprep.mubr.bf16.mxu0 0
        %871 = vmatmul.mubr.bf16.gmra.mrb[0].mxu0 %v577
        %v872 = vpop.f32.mrb[0].mxu0
        %v873 = vadd.f32 %v701, %v872
        %v874 = vpop.f32.mrb[0].mxu0
        %v875 = vpop.f32.mrb[0].mxu0
        %v876 = vadd.f32 %v702, %v875
        %v877 = vpop.f32.mrb[0].mxu0
        %878 = vmatprep.mubr.bf16.mxu0 0
        %879 = vmatmul.mubr.bf16.gmra.mrb[0].mxu0 %v578
        %v880 = vpop.f32.mrb[0].mxu0
        %v881 = vadd.f32 %v703, %v880
        %v882 = vpop.f32.mrb[0].mxu0
        %v883 = vpop.f32.mrb[0].mxu0
        %v884 = vadd.f32 %v704, %v883
        %v885 = vpop.f32.mrb[0].mxu0
        %886 = vmatprep.mubr.bf16.mxu0 0
        %887 = vmatmul.mubr.bf16.gmra.mrb[0].mxu0 %v579
        %v888 = vpop.f32.mrb[0].mxu0
        %v889 = vadd.f32 %v705, %v888
        %v890 = vpop.f32.mrb[0].mxu0
        %v891 = vpop.f32.mrb[0].mxu0
        %v892 = vadd.f32 %v706, %v891
        %v893 = vpop.f32.mrb[0].mxu0
        %894 = vmatprep.mubr.bf16.mxu0 0
        %895 = vmatmul.mubr.bf16.gmra.mrb[0].mxu0 %v580
        %v896 = vpop.f32.mrb[0].mxu0
        %v897 = vadd.f32 %v707, %v896
        %v898 = vpop.f32.mrb[0].mxu0
        %v899 = vpop.f32.mrb[0].mxu0
        %v900 = vadd.f32 %v708, %v899
        %v901 = vpop.f32.mrb[0].mxu0
        %902 = vdwg.mxu0
        %903 = vmatprep.subr.bf16.mxu0 0
        %904 = vmatpush1.bf16.xpose.msra.mxu0 %v677
        %905 = vmatprep.subr.bf16.mxu0 0
        %906 = vmatpush1.bf16.xpose.msra.mxu0 %v678
        %907 = vmatprep.subr.bf16.mxu0 0
        %908 = vmatpush1.bf16.xpose.msra.mxu0 %v679
        %909 = vmatprep.subr.bf16.mxu0 0
        %910 = vmatpush1.bf16.xpose.msra.mxu0 %v680
        %911 = vmatprep.subr.bf16.mxu0 0
        %912 = vmatpush1.bf16.xpose.msra.mxu0 %v681
        %913 = vmatprep.subr.bf16.mxu0 0
        %914 = vmatpush1.bf16.xpose.msra.mxu0 %v682
        %915 = vmatprep.subr.bf16.mxu0 0
        %916 = vmatpush1.bf16.xpose.msra.mxu0 %v683
        %917 = vmatprep.subr.bf16.mxu0 0
        %918 = vmatpush1.bf16.xpose.msra.mxu0 %v684
        %919 = vmatprep.subr.bf16.mxu0 0
        %920 = vmatpush1.bf16.xpose.msra.mxu0 0
        %921 = vmatprep.subr.bf16.mxu0 0
        %922 = vmatpush1.bf16.xpose.msra.mxu0 0
        %923 = vmatprep.subr.bf16.mxu0 0
        %924 = vmatpush1.bf16.xpose.msra.mxu0 0
        %925 = vmatprep.subr.bf16.mxu0 0
        %926 = vmatpush1.bf16.xpose.msra.mxu0 0
        %927 = vmatprep.subr.bf16.mxu0 0
        %928 = vmatpush1.bf16.xpose.msra.mxu0 0
        %929 = vmatprep.subr.bf16.mxu0 0
        %930 = vmatpush1.bf16.xpose.msra.mxu0 0
        %931 = vmatprep.subr.bf16.mxu0 0
        %932 = vmatpush1.bf16.xpose.msra.mxu0 0
        %933 = vmatprep.subr.bf16.mxu0 0
        %934 = vmatpush1.bf16.xpose.msra.mxu0 0
        %935 = vmatprep.mubr.bf16.mxu0 0
        %936 = vmatmul.mubr.bf16.gmra.mrb[0].mxu0 %v581
        %v937 = vpop.f32.mrb[0].mxu0
        %v938 = vadd.f32 %v693, %v937
        %v939 = vpop.f32.mrb[0].mxu0
        %v940 = vpop.f32.mrb[0].mxu0
        %v941 = vadd.f32 %v694, %v940
        %v942 = vpop.f32.mrb[0].mxu0
        %943 = vmatprep.mubr.bf16.mxu0 0
        %944 = vmatmul.mubr.bf16.gmra.mrb[0].mxu0 %v582
        %v945 = vpop.f32.mrb[0].mxu0
        %v946 = vadd.f32 %v695, %v945
        %v947 = vpop.f32.mrb[0].mxu0
        %v948 = vpop.f32.mrb[0].mxu0
        %v949 = vadd.f32 %v696, %v948
        %v950 = vpop.f32.mrb[0].mxu0
        %951 = vmatprep.mubr.bf16.mxu0 0
        %952 = vmatmul.mubr.bf16.gmra.mrb[0].mxu0 %v583
        %v953 = vpop.f32.mrb[0].mxu0
        %v954 = vadd.f32 %v697, %v953
        %v955 = vpop.f32.mrb[0].mxu0
        %v956 = vpop.f32.mrb[0].mxu0
        %v957 = vadd.f32 %v698, %v956
        %v958 = vpop.f32.mrb[0].mxu0
        %959 = vmatprep.mubr.bf16.mxu0 0
        %960 = vmatmul.mubr.bf16.gmra.mrb[0].mxu0 %v584
        %v961 = vpop.f32.mrb[0].mxu0
        %v962 = vadd.f32 %v699, %v961
        %v963 = vpop.f32.mrb[0].mxu0
        %v964 = vpop.f32.mrb[0].mxu0
        %v965 = vadd.f32 %v700, %v964
        %v966 = vpop.f32.mrb[0].mxu0
        %967 = vmatprep.mubr.bf16.mxu0 0
        %968 = vmatmul.mubr.bf16.gmra.mrb[0].mxu0 %v585
        %v969 = vpop.f32.mrb[0].mxu0
        %v970 = vadd.f32 %v701, %v969
        %v971 = vpop.f32.mrb[0].mxu0
        %v972 = vpop.f32.mrb[0].mxu0
        %v973 = vadd.f32 %v702, %v972
        %v974 = vpop.f32.mrb[0].mxu0
        %975 = vmatprep.mubr.bf16.mxu0 0
        %976 = vmatmul.mubr.bf16.gmra.mrb[0].mxu0 %v586
        %v977 = vpop.f32.mrb[0].mxu0
        %v978 = vadd.f32 %v703, %v977
        %v979 = vpop.f32.mrb[0].mxu0
        %v980 = vpop.f32.mrb[0].mxu0
        %v981 = vadd.f32 %v704, %v980
        %v982 = vpop.f32.mrb[0].mxu0
        %983 = vmatprep.mubr.bf16.mxu0 0
        %984 = vmatmul.mubr.bf16.gmra.mrb[0].mxu0 %v587
        %v985 = vpop.f32.mrb[0].mxu0
        %v986 = vadd.f32 %v705, %v985
        %v987 = vpop.f32.mrb[0].mxu0
        %v988 = vpop.f32.mrb[0].mxu0
        %v989 = vadd.f32 %v706, %v988
        %v990 = vpop.f32.mrb[0].mxu0
        %991 = vmatprep.mubr.bf16.mxu0 0
        %992 = vmatmul.mubr.bf16.gmra.mrb[0].mxu0 %v588
        %v993 = vpop.f32.mrb[0].mxu0
        %v994 = vadd.f32 %v707, %v993
        %v995 = vpop.f32.mrb[0].mxu0
        %v996 = vpop.f32.mrb[0].mxu0
        %v997 = vadd.f32 %v708, %v996
        %v998 = vpop.f32.mrb[0].mxu0
        %999 = vdwg.mxu0
        %1000 = vmatprep.subr.bf16.mxu0 0
        %1001 = vmatpush1.bf16.xpose.msra.mxu0 %v685
        %1002 = vmatprep.subr.bf16.mxu0 0
        %1003 = vmatpush1.bf16.xpose.msra.mxu0 %v686
        %1004 = vmatprep.subr.bf16.mxu0 0
        %1005 = vmatpush1.bf16.xpose.msra.mxu0 %v687
        %1006 = vmatprep.subr.bf16.mxu0 0
        %1007 = vmatpush1.bf16.xpose.msra.mxu0 %v688
        %1008 = vmatprep.subr.bf16.mxu0 0
        %1009 = vmatpush1.bf16.xpose.msra.mxu0 %v689
        %1010 = vmatprep.subr.bf16.mxu0 0
        %1011 = vmatpush1.bf16.xpose.msra.mxu0 %v690
        %1012 = vmatprep.subr.bf16.mxu0 0
        %1013 = vmatpush1.bf16.xpose.msra.mxu0 %v691
        %1014 = vmatprep.subr.bf16.mxu0 0
        %1015 = vmatpush1.bf16.xpose.msra.mxu0 %v692
        %1016 = vmatprep.subr.bf16.mxu0 0
        %1017 = vmatpush1.bf16.xpose.msra.mxu0 0
        %1018 = vmatprep.subr.bf16.mxu0 0
        %1019 = vmatpush1.bf16.xpose.msra.mxu0 0
        %1020 = vmatprep.subr.bf16.mxu0 0
        %1021 = vmatpush1.bf16.xpose.msra.mxu0 0
        %1022 = vmatprep.subr.bf16.mxu0 0
        %1023 = vmatpush1.bf16.xpose.msra.mxu0 0
        %1024 = vmatprep.subr.bf16.mxu0 0
        %1025 = vmatpush1.bf16.xpose.msra.mxu0 0
        %1026 = vmatprep.subr.bf16.mxu0 0
        %1027 = vmatpush1.bf16.xpose.msra.mxu0 0
        %1028 = vmatprep.subr.bf16.mxu0 0
        %1029 = vmatpush1.bf16.xpose.msra.mxu0 0
        %1030 = vmatprep.subr.bf16.mxu0 0
        %1031 = vmatpush1.bf16.xpose.msra.mxu0 0
        %1032 = vmatprep.mubr.bf16.mxu0 0
        %1033 = vmatmul.mubr.bf16.gmra.mrb[0].mxu0 %v589
        %v1034 = vpop.f32.mrb[0].mxu0
        %v1035 = vadd.f32 %v693, %v1034
        %v1036 = vpop.f32.mrb[0].mxu0
        %v1037 = vpop.f32.mrb[0].mxu0
        %v1038 = vadd.f32 %v694, %v1037
        %v1039 = vpop.f32.mrb[0].mxu0
        %1040 = vmatprep.mubr.bf16.mxu0 0
        %1041 = vmatmul.mubr.bf16.gmra.mrb[0].mxu0 %v590
        %v1042 = vpop.f32.mrb[0].mxu0
        %v1043 = vadd.f32 %v695, %v1042
        %v1044 = vpop.f32.mrb[0].mxu0
        %v1045 = vpop.f32.mrb[0].mxu0
        %v1046 = vadd.f32 %v696, %v1045
        %v1047 = vpop.f32.mrb[0].mxu0
        %1048 = vmatprep.mubr.bf16.mxu0 0
        %1049 = vmatmul.mubr.bf16.gmra.mrb[0].mxu0 %v591
        %v1050 = vpop.f32.mrb[0].mxu0
        %v1051 = vadd.f32 %v697, %v1050
        %v1052 = vpop.f32.mrb[0].mxu0
        %v1053 = vpop.f32.mrb[0].mxu0
        %v1054 = vadd.f32 %v698, %v1053
        %v1055 = vpop.f32.mrb[0].mxu0
        %1056 = vmatprep.mubr.bf16.mxu0 0
        %1057 = vmatmul.mubr.bf16.gmra.mrb[0].mxu0 %v592
        %v1058 = vpop.f32.mrb[0].mxu0
        %v1059 = vadd.f32 %v699, %v1058
        %v1060 = vpop.f32.mrb[0].mxu0
        %v1061 = vpop.f32.mrb[0].mxu0
        %v1062 = vadd.f32 %v700, %v1061
        %v1063 = vpop.f32.mrb[0].mxu0
        %1064 = vmatprep.mubr.bf16.mxu0 0
        %1065 = vmatmul.mubr.bf16.gmra.mrb[0].mxu0 %v593
        %v1066 = vpop.f32.mrb[0].mxu0
        %v1067 = vadd.f32 %v701, %v1066
        %v1068 = vpop.f32.mrb[0].mxu0
        %v1069 = vpop.f32.mrb[0].mxu0
        %v1070 = vadd.f32 %v702, %v1069
        %v1071 = vpop.f32.mrb[0].mxu0
        %1072 = vmatprep.mubr.bf16.mxu0 0
        %1073 = vmatmul.mubr.bf16.gmra.mrb[0].mxu0 %v594
        %v1074 = vpop.f32.mrb[0].mxu0
        %v1075 = vadd.f32 %v703, %v1074
        %v1076 = vpop.f32.mrb[0].mxu0
        %v1077 = vpop.f32.mrb[0].mxu0
        %v1078 = vadd.f32 %v704, %v1077
        %v1079 = vpop.f32.mrb[0].mxu0
        %1080 = vmatprep.mubr.bf16.mxu0 0
        %1081 = vmatmul.mubr.bf16.gmra.mrb[0].mxu0 %v595
        %v1082 = vpop.f32.mrb[0].mxu0
        %v1083 = vadd.f32 %v705, %v1082
        %v1084 = vpop.f32.mrb[0].mxu0
        %v1085 = vpop.f32.mrb[0].mxu0
        %v1086 = vadd.f32 %v706, %v1085
        %v1087 = vpop.f32.mrb[0].mxu0
        %1088 = vmatprep.mubr.bf16.mxu0 0
        %1089 = vmatmul.mubr.bf16.gmra.mrb[0].mxu0 %v596
        %v1090 = vpop.f32.mrb[0].mxu0
        %v1091 = vadd.f32 %v707, %v1090
        %v1092 = vpop.f32.mrb[0].mxu0
        %v1093 = vpop.f32.mrb[0].mxu0
        %v1094 = vadd.f32 %v708, %v1093
        %v1095 = vpop.f32.mrb[0].mxu0
        %1096 = vdwg.mxu0
        %1097 = vmax.xlane.f32.xlu0 %v744
        %v1098 = vpop.xlane.xlu0 %1097
        %1099 = vmax.xlane.f32.xlu0 %v747
        %v1100 = vpop.xlane.xlu0 %1099
        %1101 = vmax.xlane.f32.xlu0 %v752
        %v1102 = vpop.xlane.xlu0 %1101
        %1103 = vmax.xlane.f32.xlu0 %v755
        %v1104 = vpop.xlane.xlu0 %1103
        %1105 = vmax.xlane.f32.xlu0 %v760
        %v1106 = vpop.xlane.xlu0 %1105
        %1107 = vmax.xlane.f32.xlu0 %v763
        %v1108 = vpop.xlane.xlu0 %1107
        %1109 = vmax.xlane.f32.xlu0 %v768
        %v1110 = vpop.xlane.xlu0 %1109
        %1111 = vmax.xlane.f32.xlu0 %v771
        %v1112 = vpop.xlane.xlu0 %1111
        %1113 = vmax.xlane.f32.xlu0 %v776
        %v1114 = vpop.xlane.xlu0 %1113
        %1115 = vmax.xlane.f32.xlu0 %v779
        %v1116 = vpop.xlane.xlu0 %1115
        %1117 = vmax.xlane.f32.xlu0 %v784
        %v1118 = vpop.xlane.xlu0 %1117
        %1119 = vmax.xlane.f32.xlu0 %v787
        %v1120 = vpop.xlane.xlu0 %1119
        %1121 = vmax.xlane.f32.xlu0 %v792
        %v1122 = vpop.xlane.xlu0 %1121
        %1123 = vmax.xlane.f32.xlu0 %v795
        %v1124 = vpop.xlane.xlu0 %1123
        %1125 = vmax.xlane.f32.xlu0 %v800
        %v1126 = vpop.xlane.xlu0 %1125
        %1127 = vmax.xlane.f32.xlu0 %v803
        %v1128 = vpop.xlane.xlu0 %1127
        %1129 = vmax.xlane.f32.xlu0 %v841
        %v1130 = vpop.xlane.xlu0 %1129
        %1131 = vmax.xlane.f32.xlu0 %v844
        %v1132 = vpop.xlane.xlu0 %1131
        %1133 = vmax.xlane.f32.xlu0 %v849
        %v1134 = vpop.xlane.xlu0 %1133
        %1135 = vmax.xlane.f32.xlu0 %v852
        %v1136 = vpop.xlane.xlu0 %1135
        %1137 = vmax.xlane.f32.xlu0 %v857
        %v1138 = vpop.xlane.xlu0 %1137
        %1139 = vmax.xlane.f32.xlu0 %v860
        %v1140 = vpop.xlane.xlu0 %1139
        %1141 = vmax.xlane.f32.xlu0 %v865
        %v1142 = vpop.xlane.xlu0 %1141
        %1143 = vmax.xlane.f32.xlu0 %v868
        %v1144 = vpop.xlane.xlu0 %1143
        %1145 = vmax.xlane.f32.xlu0 %v873
        %v1146 = vpop.xlane.xlu0 %1145
        %1147 = vmax.xlane.f32.xlu0 %v876
        %v1148 = vpop.xlane.xlu0 %1147
        %1149 = vmax.xlane.f32.xlu0 %v881
        %v1150 = vpop.xlane.xlu0 %1149
        %1151 = vmax.xlane.f32.xlu0 %v884
        %v1152 = vpop.xlane.xlu0 %1151
        %1153 = vmax.xlane.f32.xlu0 %v889
        %v1154 = vpop.xlane.xlu0 %1153
        %1155 = vmax.xlane.f32.xlu0 %v892
        %v1156 = vpop.xlane.xlu0 %1155
        %1157 = vmax.xlane.f32.xlu0 %v897
        %v1158 = vpop.xlane.xlu0 %1157
        %1159 = vmax.xlane.f32.xlu0 %v900
        %v1160 = vpop.xlane.xlu0 %1159
        %1161 = vmax.xlane.f32.xlu0 %v938
        %v1162 = vpop.xlane.xlu0 %1161
        %1163 = vmax.xlane.f32.xlu0 %v941
        %v1164 = vpop.xlane.xlu0 %1163
        %1165 = vmax.xlane.f32.xlu0 %v946
        %v1166 = vpop.xlane.xlu0 %1165
        %1167 = vmax.xlane.f32.xlu0 %v949
        %v1168 = vpop.xlane.xlu0 %1167
        %1169 = vmax.xlane.f32.xlu0 %v954
        %v1170 = vpop.xlane.xlu0 %1169
        %1171 = vmax.xlane.f32.xlu0 %v957
        %v1172 = vpop.xlane.xlu0 %1171
        %1173 = vmax.xlane.f32.xlu0 %v962
        %v1174 = vpop.xlane.xlu0 %1173
        %1175 = vmax.xlane.f32.xlu0 %v965
        %v1176 = vpop.xlane.xlu0 %1175
        %1177 = vmax.xlane.f32.xlu0 %v970
        %v1178 = vpop.xlane.xlu0 %1177
        %1179 = vmax.xlane.f32.xlu0 %v973
        %v1180 = vpop.xlane.xlu0 %1179
        %1181 = vmax.xlane.f32.xlu0 %v978
        %v1182 = vpop.xlane.xlu0 %1181
        %1183 = vmax.xlane.f32.xlu0 %v981
        %v1184 = vpop.xlane.xlu0 %1183
        %1185 = vmax.xlane.f32.xlu0 %v986
        %v1186 = vpop.xlane.xlu0 %1185
        %1187 = vmax.xlane.f32.xlu0 %v989
        %v1188 = vpop.xlane.xlu0 %1187
        %1189 = vmax.xlane.f32.xlu0 %v994
        %v1190 = vpop.xlane.xlu0 %1189
        %1191 = vmax.xlane.f32.xlu0 %v997
        %v1192 = vpop.xlane.xlu0 %1191
        %1193 = vmax.xlane.f32.xlu0 %v1035
        %v1194 = vpop.xlane.xlu0 %1193
        %1195 = vmax.xlane.f32.xlu0 %v1038
        %v1196 = vpop.xlane.xlu0 %1195
        %1197 = vmax.xlane.f32.xlu0 %v1043
        %v1198 = vpop.xlane.xlu0 %1197
        %1199 = vmax.xlane.f32.xlu0 %v1046
        %v1200 = vpop.xlane.xlu0 %1199
        %1201 = vmax.xlane.f32.xlu0 %v1051
        %v1202 = vpop.xlane.xlu0 %1201
        %1203 = vmax.xlane.f32.xlu0 %v1054
        %v1204 = vpop.xlane.xlu0 %1203
        %1205 = vmax.xlane.f32.xlu0 %v1059
        %v1206 = vpop.xlane.xlu0 %1205
        %1207 = vmax.xlane.f32.xlu0 %v1062
        %v1208 = vpop.xlane.xlu0 %1207
        %1209 = vmax.xlane.f32.xlu0 %v1067
        %v1210 = vpop.xlane.xlu0 %1209
        %1211 = vmax.xlane.f32.xlu0 %v1070
        %v1212 = vpop.xlane.xlu0 %1211
        %1213 = vmax.xlane.f32.xlu0 %v1075
        %v1214 = vpop.xlane.xlu0 %1213
        %1215 = vmax.xlane.f32.xlu0 %v1078
        %v1216 = vpop.xlane.xlu0 %1215
        %1217 = vmax.xlane.f32.xlu0 %v1083
        %v1218 = vpop.xlane.xlu0 %1217
        %1219 = vmax.xlane.f32.xlu0 %v1086
        %v1220 = vpop.xlane.xlu0 %1219
        %1221 = vmax.xlane.f32.xlu0 %v1091
        %v1222 = vpop.xlane.xlu0 %1221
        %1223 = vmax.xlane.f32.xlu0 %v1094
        %v1224 = vpop.xlane.xlu0 %1223
        %v1225 = vsub.f32 %v744, %v1098
        %v1226 = vsub.f32 %v747, %v1100
        %v1227 = vsub.f32 %v752, %v1102
        %v1228 = vsub.f32 %v755, %v1104
        %v1229 = vsub.f32 %v760, %v1106
        %v1230 = vsub.f32 %v763, %v1108
        %v1231 = vsub.f32 %v768, %v1110
        %v1232 = vsub.f32 %v771, %v1112
        %v1233 = vsub.f32 %v776, %v1114
        %v1234 = vsub.f32 %v779, %v1116
        %v1235 = vsub.f32 %v784, %v1118
        %v1236 = vsub.f32 %v787, %v1120
        %v1237 = vsub.f32 %v792, %v1122
        %v1238 = vsub.f32 %v795, %v1124
        %v1239 = vsub.f32 %v800, %v1126
        %v1240 = vsub.f32 %v803, %v1128
        %v1241 = vsub.f32 %v841, %v1130
        %v1242 = vsub.f32 %v844, %v1132
        %v1243 = vsub.f32 %v849, %v1134
        %v1244 = vsub.f32 %v852, %v1136
        %v1245 = vsub.f32 %v857, %v1138
        %v1246 = vsub.f32 %v860, %v1140
        %v1247 = vsub.f32 %v865, %v1142
        %v1248 = vsub.f32 %v868, %v1144
        %v1249 = vsub.f32 %v873, %v1146
        %v1250 = vsub.f32 %v876, %v1148
        %v1251 = vsub.f32 %v881, %v1150
        %v1252 = vsub.f32 %v884, %v1152
        %v1253 = vsub.f32 %v889, %v1154
        %v1254 = vsub.f32 %v892, %v1156
        %v1255 = vsub.f32 %v897, %v1158
        %v1256 = vsub.f32 %v900, %v1160
        %v1257 = vsub.f32 %v938, %v1162
        %v1258 = vsub.f32 %v941, %v1164
        %v1259 = vsub.f32 %v946, %v1166
        %v1260 = vsub.f32 %v949, %v1168
        %v1261 = vsub.f32 %v954, %v1170
        %v1262 = vsub.f32 %v957, %v1172
        %v1263 = vsub.f32 %v962, %v1174
        %v1264 = vsub.f32 %v965, %v1176
        %v1265 = vsub.f32 %v970, %v1178
        %v1266 = vsub.f32 %v973, %v1180
        %v1267 = vsub.f32 %v978, %v1182
        %v1268 = vsub.f32 %v981, %v1184
        %v1269 = vsub.f32 %v986, %v1186
        %v1270 = vsub.f32 %v989, %v1188
        %v1271 = vsub.f32 %v994, %v1190
        %v1272 = vsub.f32 %v997, %v1192
        %v1273 = vsub.f32 %v1035, %v1194
        %v1274 = vsub.f32 %v1038, %v1196
        %v1275 = vsub.f32 %v1043, %v1198
        %v1276 = vsub.f32 %v1046, %v1200
        %v1277 = vsub.f32 %v1051, %v1202
        %v1278 = vsub.f32 %v1054, %v1204
        %v1279 = vsub.f32 %v1059, %v1206
        %v1280 = vsub.f32 %v1062, %v1208
        %v1281 = vsub.f32 %v1067, %v1210
        %v1282 = vsub.f32 %v1070, %v1212
        %v1283 = vsub.f32 %v1075, %v1214
        %v1284 = vsub.f32 %v1078, %v1216
        %v1285 = vsub.f32 %v1083, %v1218
        %v1286 = vsub.f32 %v1086, %v1220
        %v1287 = vsub.f32 %v1091, %v1222
        %v1288 = vsub.f32 %v1094, %v1224
        %v1289 = vmul.f32 %v1225, 1.442695
        %v1290 = vpow.pop %v1289
        %v1291 = vmul.f32 %v1226, 1.442695
        %v1292 = vpow.pop %v1291
        %v1293 = vmul.f32 %v1227, 1.442695
        %v1294 = vpow.pop %v1293
        %v1295 = vmul.f32 %v1228, 1.442695
        %v1296 = vpow.pop %v1295
        %v1297 = vmul.f32 %v1229, 1.442695
        %v1298 = vpow.pop %v1297
        %v1299 = vmul.f32 %v1230, 1.442695
        %v1300 = vpow.pop %v1299
        %v1301 = vmul.f32 %v1231, 1.442695
        %v1302 = vpow.pop %v1301
        %v1303 = vmul.f32 %v1232, 1.442695
        %v1304 = vpow.pop %v1303
        %v1305 = vmul.f32 %v1233, 1.442695
        %v1306 = vpow.pop %v1305
        %v1307 = vmul.f32 %v1234, 1.442695
        %v1308 = vpow.pop %v1307
        %v1309 = vmul.f32 %v1235, 1.442695
        %v1310 = vpow.pop %v1309
        %v1311 = vmul.f32 %v1236, 1.442695
        %v1312 = vpow.pop %v1311
        %v1313 = vmul.f32 %v1237, 1.442695
        %v1314 = vpow.pop %v1313
        %v1315 = vmul.f32 %v1238, 1.442695
        %v1316 = vpow.pop %v1315
        %v1317 = vmul.f32 %v1239, 1.442695
        %v1318 = vpow.pop %v1317
        %v1319 = vmul.f32 %v1240, 1.442695
        %v1320 = vpow.pop %v1319
        %v1321 = vmul.f32 %v1241, 1.442695
        %v1322 = vpow.pop %v1321
        %v1323 = vmul.f32 %v1242, 1.442695
        %v1324 = vpow.pop %v1323
        %v1325 = vmul.f32 %v1243, 1.442695
        %v1326 = vpow.pop %v1325
        %v1327 = vmul.f32 %v1244, 1.442695
        %v1328 = vpow.pop %v1327
        %v1329 = vmul.f32 %v1245, 1.442695
        %v1330 = vpow.pop %v1329
        %v1331 = vmul.f32 %v1246, 1.442695
        %v1332 = vpow.pop %v1331
        %v1333 = vmul.f32 %v1247, 1.442695
        %v1334 = vpow.pop %v1333
        %v1335 = vmul.f32 %v1248, 1.442695
        %v1336 = vpow.pop %v1335
        %v1337 = vmul.f32 %v1249, 1.442695
        %v1338 = vpow.pop %v1337
        %v1339 = vmul.f32 %v1250, 1.442695
        %v1340 = vpow.pop %v1339
        %v1341 = vmul.f32 %v1251, 1.442695
        %v1342 = vpow.pop %v1341
        %v1343 = vmul.f32 %v1252, 1.442695
        %v1344 = vpow.pop %v1343
        %v1345 = vmul.f32 %v1253, 1.442695
        %v1346 = vpow.pop %v1345
        %v1347 = vmul.f32 %v1254, 1.442695
        %v1348 = vpow.pop %v1347
        %v1349 = vmul.f32 %v1255, 1.442695
        %v1350 = vpow.pop %v1349
        %v1351 = vmul.f32 %v1256, 1.442695
        %v1352 = vpow.pop %v1351
        %v1353 = vmul.f32 %v1257, 1.442695
        %v1354 = vpow.pop %v1353
        %v1355 = vmul.f32 %v1258, 1.442695
        %v1356 = vpow.pop %v1355
        %v1357 = vmul.f32 %v1259, 1.442695
        %v1358 = vpow.pop %v1357
        %v1359 = vmul.f32 %v1260, 1.442695
        %v1360 = vpow.pop %v1359
        %v1361 = vmul.f32 %v1261, 1.442695
        %v1362 = vpow.pop %v1361
        %v1363 = vmul.f32 %v1262, 1.442695
        %v1364 = vpow.pop %v1363
        %v1365 = vmul.f32 %v1263, 1.442695
        %v1366 = vpow.pop %v1365
        %v1367 = vmul.f32 %v1264, 1.442695
        %v1368 = vpow.pop %v1367
        %v1369 = vmul.f32 %v1265, 1.442695
        %v1370 = vpow.pop %v1369
        %v1371 = vmul.f32 %v1266, 1.442695
        %v1372 = vpow.pop %v1371
        %v1373 = vmul.f32 %v1267, 1.442695
        %v1374 = vpow.pop %v1373
        %v1375 = vmul.f32 %v1268, 1.442695
        %v1376 = vpow.pop %v1375
        %v1377 = vmul.f32 %v1269, 1.442695
        %v1378 = vpow.pop %v1377
        %v1379 = vmul.f32 %v1270, 1.442695
        %v1380 = vpow.pop %v1379
        %v1381 = vmul.f32 %v1271, 1.442695
        %v1382 = vpow.pop %v1381
        %v1383 = vmul.f32 %v1272, 1.442695
        %v1384 = vpow.pop %v1383
        %v1385 = vmul.f32 %v1273, 1.442695
        %v1386 = vpow.pop %v1385
        %v1387 = vmul.f32 %v1274, 1.442695
        %v1388 = vpow.pop %v1387
        %v1389 = vmul.f32 %v1275, 1.442695
        %v1390 = vpow.pop %v1389
        %v1391 = vmul.f32 %v1276, 1.442695
        %v1392 = vpow.pop %v1391
        %v1393 = vmul.f32 %v1277, 1.442695
        %v1394 = vpow.pop %v1393
        %v1395 = vmul.f32 %v1278, 1.442695
        %v1396 = vpow.pop %v1395
        %v1397 = vmul.f32 %v1279, 1.442695
        %v1398 = vpow.pop %v1397
        %v1399 = vmul.f32 %v1280, 1.442695
        %v1400 = vpow.pop %v1399
        %v1401 = vmul.f32 %v1281, 1.442695
        %v1402 = vpow.pop %v1401
        %v1403 = vmul.f32 %v1282, 1.442695
        %v1404 = vpow.pop %v1403
        %v1405 = vmul.f32 %v1283, 1.442695
        %v1406 = vpow.pop %v1405
        %v1407 = vmul.f32 %v1284, 1.442695
        %v1408 = vpow.pop %v1407
        %v1409 = vmul.f32 %v1285, 1.442695
        %v1410 = vpow.pop %v1409
        %v1411 = vmul.f32 %v1286, 1.442695
        %v1412 = vpow.pop %v1411
        %v1413 = vmul.f32 %v1287, 1.442695
        %v1414 = vpow.pop %v1413
        %v1415 = vmul.f32 %v1288, 1.442695
        %v1416 = vpow.pop %v1415
        %1417 = vadd.xlane.f32.xlu0 %v1290
        %v1418 = vpop.xlane.xlu0 %1417
        %1419 = vadd.xlane.f32.xlu0 %v1292
        %v1420 = vpop.xlane.xlu0 %1419
        %1421 = vadd.xlane.f32.xlu0 %v1294
        %v1422 = vpop.xlane.xlu0 %1421
        %1423 = vadd.xlane.f32.xlu0 %v1296
        %v1424 = vpop.xlane.xlu0 %1423
        %1425 = vadd.xlane.f32.xlu0 %v1298
        %v1426 = vpop.xlane.xlu0 %1425
        %1427 = vadd.xlane.f32.xlu0 %v1300
        %v1428 = vpop.xlane.xlu0 %1427
        %1429 = vadd.xlane.f32.xlu0 %v1302
        %v1430 = vpop.xlane.xlu0 %1429
        %1431 = vadd.xlane.f32.xlu0 %v1304
        %v1432 = vpop.xlane.xlu0 %1431
        %1433 = vadd.xlane.f32.xlu0 %v1306
        %v1434 = vpop.xlane.xlu0 %1433
        %1435 = vadd.xlane.f32.xlu0 %v1308
        %v1436 = vpop.xlane.xlu0 %1435
        %1437 = vadd.xlane.f32.xlu0 %v1310
        %v1438 = vpop.xlane.xlu0 %1437
        %1439 = vadd.xlane.f32.xlu0 %v1312
        %v1440 = vpop.xlane.xlu0 %1439
        %1441 = vadd.xlane.f32.xlu0 %v1314
        %v1442 = vpop.xlane.xlu0 %1441
        %1443 = vadd.xlane.f32.xlu0 %v1316
        %v1444 = vpop.xlane.xlu0 %1443
        %1445 = vadd.xlane.f32.xlu0 %v1318
        %v1446 = vpop.xlane.xlu0 %1445
        %1447 = vadd.xlane.f32.xlu0 %v1320
        %v1448 = vpop.xlane.xlu0 %1447
        %1449 = vadd.xlane.f32.xlu0 %v1322
        %v1450 = vpop.xlane.xlu0 %1449
        %1451 = vadd.xlane.f32.xlu0 %v1324
        %v1452 = vpop.xlane.xlu0 %1451
        %1453 = vadd.xlane.f32.xlu0 %v1326
        %v1454 = vpop.xlane.xlu0 %1453
        %1455 = vadd.xlane.f32.xlu0 %v1328
        %v1456 = vpop.xlane.xlu0 %1455
        %1457 = vadd.xlane.f32.xlu0 %v1330
        %v1458 = vpop.xlane.xlu0 %1457
        %1459 = vadd.xlane.f32.xlu0 %v1332
        %v1460 = vpop.xlane.xlu0 %1459
        %1461 = vadd.xlane.f32.xlu0 %v1334
        %v1462 = vpop.xlane.xlu0 %1461
        %1463 = vadd.xlane.f32.xlu0 %v1336
        %v1464 = vpop.xlane.xlu0 %1463
        %1465 = vadd.xlane.f32.xlu0 %v1338
        %v1466 = vpop.xlane.xlu0 %1465
        %1467 = vadd.xlane.f32.xlu0 %v1340
        %v1468 = vpop.xlane.xlu0 %1467
        %1469 = vadd.xlane.f32.xlu0 %v1342
        %v1470 = vpop.xlane.xlu0 %1469
        %1471 = vadd.xlane.f32.xlu0 %v1344
        %v1472 = vpop.xlane.xlu0 %1471
        %1473 = vadd.xlane.f32.xlu0 %v1346
        %v1474 = vpop.xlane.xlu0 %1473
        %1475 = vadd.xlane.f32.xlu0 %v1348
        %v1476 = vpop.xlane.xlu0 %1475
        %1477 = vadd.xlane.f32.xlu0 %v1350
        %v1478 = vpop.xlane.xlu0 %1477
        %1479 = vadd.xlane.f32.xlu0 %v1352
        %v1480 = vpop.xlane.xlu0 %1479
        %1481 = vadd.xlane.f32.xlu0 %v1354
        %v1482 = vpop.xlane.xlu0 %1481
        %1483 = vadd.xlane.f32.xlu0 %v1356
        %v1484 = vpop.xlane.xlu0 %1483
        %1485 = vadd.xlane.f32.xlu0 %v1358
        %v1486 = vpop.xlane.xlu0 %1485
        %1487 = vadd.xlane.f32.xlu0 %v1360
        %v1488 = vpop.xlane.xlu0 %1487
        %1489 = vadd.xlane.f32.xlu0 %v1362
        %v1490 = vpop.xlane.xlu0 %1489
        %1491 = vadd.xlane.f32.xlu0 %v1364
        %v1492 = vpop.xlane.xlu0 %1491
        %1493 = vadd.xlane.f32.xlu0 %v1366
        %v1494 = vpop.xlane.xlu0 %1493
        %1495 = vadd.xlane.f32.xlu0 %v1368
        %v1496 = vpop.xlane.xlu0 %1495
        %1497 = vadd.xlane.f32.xlu0 %v1370
        %v1498 = vpop.xlane.xlu0 %1497
        %1499 = vadd.xlane.f32.xlu0 %v1372
        %v1500 = vpop.xlane.xlu0 %1499
        %1501 = vadd.xlane.f32.xlu0 %v1374
        %v1502 = vpop.xlane.xlu0 %1501
        %1503 = vadd.xlane.f32.xlu0 %v1376
        %v1504 = vpop.xlane.xlu0 %1503
        %1505 = vadd.xlane.f32.xlu0 %v1378
        %v1506 = vpop.xlane.xlu0 %1505
        %1507 = vadd.xlane.f32.xlu0 %v1380
        %v1508 = vpop.xlane.xlu0 %1507
        %1509 = vadd.xlane.f32.xlu0 %v1382
        %v1510 = vpop.xlane.xlu0 %1509
        %1511 = vadd.xlane.f32.xlu0 %v1384
        %v1512 = vpop.xlane.xlu0 %1511
        %1513 = vadd.xlane.f32.xlu0 %v1386
        %v1514 = vpop.xlane.xlu0 %1513
        %1515 = vadd.xlane.f32.xlu0 %v1388
        %v1516 = vpop.xlane.xlu0 %1515
        %1517 = vadd.xlane.f32.xlu0 %v1390
        %v1518 = vpop.xlane.xlu0 %1517
        %1519 = vadd.xlane.f32.xlu0 %v1392
        %v1520 = vpop.xlane.xlu0 %1519
        %1521 = vadd.xlane.f32.xlu0 %v1394
        %v1522 = vpop.xlane.xlu0 %1521
        %1523 = vadd.xlane.f32.xlu0 %v1396
        %v1524 = vpop.xlane.xlu0 %1523
        %1525 = vadd.xlane.f32.xlu0 %v1398
        %v1526 = vpop.xlane.xlu0 %1525
        %1527 = vadd.xlane.f32.xlu0 %v1400
        %v1528 = vpop.xlane.xlu0 %1527
        %1529 = vadd.xlane.f32.xlu0 %v1402
        %v1530 = vpop.xlane.xlu0 %1529
        %1531 = vadd.xlane.f32.xlu0 %v1404
        %v1532 = vpop.xlane.xlu0 %1531
        %1533 = vadd.xlane.f32.xlu0 %v1406
        %v1534 = vpop.xlane.xlu0 %1533
        %1535 = vadd.xlane.f32.xlu0 %v1408
        %v1536 = vpop.xlane.xlu0 %1535
        %1537 = vadd.xlane.f32.xlu0 %v1410
        %v1538 = vpop.xlane.xlu0 %1537
        %1539 = vadd.xlane.f32.xlu0 %v1412
        %v1540 = vpop.xlane.xlu0 %1539
        %1541 = vadd.xlane.f32.xlu0 %v1414
        %v1542 = vpop.xlane.xlu0 %1541
        %1543 = vadd.xlane.f32.xlu0 %v1416
        %v1544 = vpop.xlane.xlu0 %1543
        %v1545 = vrcp.pop %v1418
        %v1546 = vrcp.pop %v1420
        %v1547 = vrcp.pop %v1422
        %v1548 = vrcp.pop %v1424
        %v1549 = vrcp.pop %v1426
        %v1550 = vrcp.pop %v1428
        %v1551 = vrcp.pop %v1430
        %v1552 = vrcp.pop %v1432
        %v1553 = vrcp.pop %v1434
        %v1554 = vrcp.pop %v1436
        %v1555 = vrcp.pop %v1438
        %v1556 = vrcp.pop %v1440
        %v1557 = vrcp.pop %v1442
        %v1558 = vrcp.pop %v1444
        %v1559 = vrcp.pop %v1446
        %v1560 = vrcp.pop %v1448
        %v1561 = vrcp.pop %v1450
        %v1562 = vrcp.pop %v1452
        %v1563 = vrcp.pop %v1454
        %v1564 = vrcp.pop %v1456
        %v1565 = vrcp.pop %v1458
        %v1566 = vrcp.pop %v1460
        %v1567 = vrcp.pop %v1462
        %v1568 = vrcp.pop %v1464
        %v1569 = vrcp.pop %v1466
        %v1570 = vrcp.pop %v1468
        %v1571 = vrcp.pop %v1470
        %v1572 = vrcp.pop %v1472
        %v1573 = vrcp.pop %v1474
        %v1574 = vrcp.pop %v1476
        %v1575 = vrcp.pop %v1478
        %v1576 = vrcp.pop %v1480
        %v1577 = vrcp.pop %v1482
        %v1578 = vrcp.pop %v1484
        %v1579 = vrcp.pop %v1486
        %v1580 = vrcp.pop %v1488
        %v1581 = vrcp.pop %v1490
        %v1582 = vrcp.pop %v1492
        %v1583 = vrcp.pop %v1494
        %v1584 = vrcp.pop %v1496
        %v1585 = vrcp.pop %v1498
        %v1586 = vrcp.pop %v1500
        %v1587 = vrcp.pop %v1502
        %v1588 = vrcp.pop %v1504
        %v1589 = vrcp.pop %v1506
        %v1590 = vrcp.pop %v1508
        %v1591 = vrcp.pop %v1510
        %v1592 = vrcp.pop %v1512
        %v1593 = vrcp.pop %v1514
        %v1594 = vrcp.pop %v1516
        %v1595 = vrcp.pop %v1518
        %v1596 = vrcp.pop %v1520
        %v1597 = vrcp.pop %v1522
        %v1598 = vrcp.pop %v1524
        %v1599 = vrcp.pop %v1526
        %v1600 = vrcp.pop %v1528
        %v1601 = vrcp.pop %v1530
        %v1602 = vrcp.pop %v1532
        %v1603 = vrcp.pop %v1534
        %v1604 = vrcp.pop %v1536
        %v1605 = vrcp.pop %v1538
        %v1606 = vrcp.pop %v1540
        %v1607 = vrcp.pop %v1542
        %v1608 = vrcp.pop %v1544
        %v1609 = vmul.f32 %v1545, 1.0526316
        %v1610 = vmul.f32 %v1546, 1.0526316
        %v1611 = vmul.f32 %v1547, 1.0526316
        %v1612 = vmul.f32 %v1548, 1.0526316
        %v1613 = vmul.f32 %v1549, 1.0526316
        %v1614 = vmul.f32 %v1550, 1.0526316
        %v1615 = vmul.f32 %v1551, 1.0526316
        %v1616 = vmul.f32 %v1552, 1.0526316
        %v1617 = vmul.f32 %v1553, 1.0526316
        %v1618 = vmul.f32 %v1554, 1.0526316
        %v1619 = vmul.f32 %v1555, 1.0526316
        %v1620 = vmul.f32 %v1556, 1.0526316
        %v1621 = vmul.f32 %v1557, 1.0526316
        %v1622 = vmul.f32 %v1558, 1.0526316
        %v1623 = vmul.f32 %v1559, 1.0526316
        %v1624 = vmul.f32 %v1560, 1.0526316
        %v1625 = vmul.f32 %v1561, 1.0526316
        %v1626 = vmul.f32 %v1562, 1.0526316
        %v1627 = vmul.f32 %v1563, 1.0526316
        %v1628 = vmul.f32 %v1564, 1.0526316
        %v1629 = vmul.f32 %v1565, 1.0526316
        %v1630 = vmul.f32 %v1566, 1.0526316
        %v1631 = vmul.f32 %v1567, 1.0526316
        %v1632 = vmul.f32 %v1568, 1.0526316
        %v1633 = vmul.f32 %v1569, 1.0526316
        %v1634 = vmul.f32 %v1570, 1.0526316
        %v1635 = vmul.f32 %v1571, 1.0526316
        %v1636 = vmul.f32 %v1572, 1.0526316
        %v1637 = vmul.f32 %v1573, 1.0526316
        %v1638 = vmul.f32 %v1574, 1.0526316
        %v1639 = vmul.f32 %v1575, 1.0526316
        %v1640 = vmul.f32 %v1576, 1.0526316
        %v1641 = vmul.f32 %v1577, 1.0526316
        %v1642 = vmul.f32 %v1578, 1.0526316
        %v1643 = vmul.f32 %v1579, 1.0526316
        %v1644 = vmul.f32 %v1580, 1.0526316
        %v1645 = vmul.f32 %v1581, 1.0526316
        %v1646 = vmul.f32 %v1582, 1.0526316
        %v1647 = vmul.f32 %v1583, 1.0526316
        %v1648 = vmul.f32 %v1584, 1.0526316
        %v1649 = vmul.f32 %v1585, 1.0526316
        %v1650 = vmul.f32 %v1586, 1.0526316
        %v1651 = vmul.f32 %v1587, 1.0526316
        %v1652 = vmul.f32 %v1588, 1.0526316
        %v1653 = vmul.f32 %v1589, 1.0526316
        %v1654 = vmul.f32 %v1590, 1.0526316
        %v1655 = vmul.f32 %v1591, 1.0526316
        %v1656 = vmul.f32 %v1592, 1.0526316
        %v1657 = vmul.f32 %v1593, 1.0526316
        %v1658 = vmul.f32 %v1594, 1.0526316
        %v1659 = vmul.f32 %v1595, 1.0526316
        %v1660 = vmul.f32 %v1596, 1.0526316
        %v1661 = vmul.f32 %v1597, 1.0526316
        %v1662 = vmul.f32 %v1598, 1.0526316
        %v1663 = vmul.f32 %v1599, 1.0526316
        %v1664 = vmul.f32 %v1600, 1.0526316
        %v1665 = vmul.f32 %v1601, 1.0526316
        %v1666 = vmul.f32 %v1602, 1.0526316
        %v1667 = vmul.f32 %v1603, 1.0526316
        %v1668 = vmul.f32 %v1604, 1.0526316
        %v1669 = vmul.f32 %v1605, 1.0526316
        %v1670 = vmul.f32 %v1606, 1.0526316
        %v1671 = vmul.f32 %v1607, 1.0526316
        %v1672 = vmul.f32 %v1608, 1.0526316
        %v1673 = vmul.f32 %v1290, %v1609
        %v1674 = vmul.f32 %v1292, %v1610
        %v1675 = vmul.f32 %v1294, %v1611
        %v1676 = vmul.f32 %v1296, %v1612
        %v1677 = vmul.f32 %v1298, %v1613
        %v1678 = vmul.f32 %v1300, %v1614
        %v1679 = vmul.f32 %v1302, %v1615
        %v1680 = vmul.f32 %v1304, %v1616
        %v1681 = vmul.f32 %v1306, %v1617
        %v1682 = vmul.f32 %v1308, %v1618
        %v1683 = vmul.f32 %v1310, %v1619
        %v1684 = vmul.f32 %v1312, %v1620
        %v1685 = vmul.f32 %v1314, %v1621
        %v1686 = vmul.f32 %v1316, %v1622
        %v1687 = vmul.f32 %v1318, %v1623
        %v1688 = vmul.f32 %v1320, %v1624
        %v1689 = vmul.f32 %v1322, %v1625
        %v1690 = vmul.f32 %v1324, %v1626
        %v1691 = vmul.f32 %v1326, %v1627
        %v1692 = vmul.f32 %v1328, %v1628
        %v1693 = vmul.f32 %v1330, %v1629
        %v1694 = vmul.f32 %v1332, %v1630
        %v1695 = vmul.f32 %v1334, %v1631
        %v1696 = vmul.f32 %v1336, %v1632
        %v1697 = vmul.f32 %v1338, %v1633
        %v1698 = vmul.f32 %v1340, %v1634
        %v1699 = vmul.f32 %v1342, %v1635
        %v1700 = vmul.f32 %v1344, %v1636
        %v1701 = vmul.f32 %v1346, %v1637
        %v1702 = vmul.f32 %v1348, %v1638
        %v1703 = vmul.f32 %v1350, %v1639
        %v1704 = vmul.f32 %v1352, %v1640
        %v1705 = vmul.f32 %v1354, %v1641
        %v1706 = vmul.f32 %v1356, %v1642
        %v1707 = vmul.f32 %v1358, %v1643
        %v1708 = vmul.f32 %v1360, %v1644
        %v1709 = vmul.f32 %v1362, %v1645
        %v1710 = vmul.f32 %v1364, %v1646
        %v1711 = vmul.f32 %v1366, %v1647
        %v1712 = vmul.f32 %v1368, %v1648
        %v1713 = vmul.f32 %v1370, %v1649
        %v1714 = vmul.f32 %v1372, %v1650
        %v1715 = vmul.f32 %v1374, %v1651
        %v1716 = vmul.f32 %v1376, %v1652
        %v1717 = vmul.f32 %v1378, %v1653
        %v1718 = vmul.f32 %v1380, %v1654
        %v1719 = vmul.f32 %v1382, %v1655
        %v1720 = vmul.f32 %v1384, %v1656
        %v1721 = vmul.f32 %v1386, %v1657
        %v1722 = vmul.f32 %v1388, %v1658
        %v1723 = vmul.f32 %v1390, %v1659
        %v1724 = vmul.f32 %v1392, %v1660
        %v1725 = vmul.f32 %v1394, %v1661
        %v1726 = vmul.f32 %v1396, %v1662
        %v1727 = vmul.f32 %v1398, %v1663
        %v1728 = vmul.f32 %v1400, %v1664
        %v1729 = vmul.f32 %v1402, %v1665
        %v1730 = vmul.f32 %v1404, %v1666
        %v1731 = vmul.f32 %v1406, %v1667
        %v1732 = vmul.f32 %v1408, %v1668
        %v1733 = vmul.f32 %v1410, %v1669
        %v1734 = vmul.f32 %v1412, %v1670
        %v1735 = vmul.f32 %v1414, %v1671
        %v1736 = vmul.f32 %v1416, %v1672
        %v1737 = vld [vmem:[%s384] sm:$0xff]
        %v1738 = vld [vmem:[%s384 + $0x8] sm:$0xff]
        %v1739 = vld [vmem:[%s384 + $0x10] sm:$0xff]
        %v1740 = vld [vmem:[%s384 + $0x18] sm:$0xff]
        %v1741 = vld [vmem:[%s384 + $0x20] sm:$0xff]
        %v1742 = vld [vmem:[%s384 + $0x28] sm:$0xff]
        %v1743 = vld [vmem:[%s384 + $0x30] sm:$0xff]
        %v1744 = vld [vmem:[%s384 + $0x38] sm:$0xff]
        %v1745 = vld [vmem:[%s384 + $0x40] sm:$0xff]
        %v1746 = vld [vmem:[%s384 + $0x48] sm:$0xff]
        %v1747 = vld [vmem:[%s384 + $0x50] sm:$0xff]
        %v1748 = vld [vmem:[%s384 + $0x58] sm:$0xff]
        %v1749 = vld [vmem:[%s384 + $0x60] sm:$0xff]
        %v1750 = vld [vmem:[%s384 + $0x68] sm:$0xff]
        %v1751 = vld [vmem:[%s384 + $0x70] sm:$0xff]
        %v1752 = vld [vmem:[%s384 + $0x78] sm:$0xff]
        %v1753 = vld [vmem:[%s384 + $0x80] sm:$0xff]
        %v1754 = vld [vmem:[%s384 + $0x88] sm:$0xff]
        %v1755 = vld [vmem:[%s384 + $0x90] sm:$0xff]
        %v1756 = vld [vmem:[%s384 + $0x98] sm:$0xff]
        %v1757 = vld [vmem:[%s384 + $0xa0] sm:$0xff]
        %v1758 = vld [vmem:[%s384 + $0xa8] sm:$0xff]
        %v1759 = vld [vmem:[%s384 + $0xb0] sm:$0xff]
        %v1760 = vld [vmem:[%s384 + $0xb8] sm:$0xff]
        %v1761 = vld [vmem:[%s384 + $0xc0] sm:$0xff]
        %v1762 = vld [vmem:[%s384 + $0xc8] sm:$0xff]
        %v1763 = vld [vmem:[%s384 + $0xd0] sm:$0xff]
        %v1764 = vld [vmem:[%s384 + $0xd8] sm:$0xff]
        %v1765 = vld [vmem:[%s384 + $0xe0] sm:$0xff]
        %v1766 = vld [vmem:[%s384 + $0xe8] sm:$0xff]
        %v1767 = vld [vmem:[%s384 + $0xf0] sm:$0xff]
        %v1768 = vld [vmem:[%s384 + $0xf8] sm:$0xff]
        %v1769 = vld [vmem:[%s384 + $0x100] sm:$0xff]
        %v1770 = vld [vmem:[%s384 + $0x108] sm:$0xff]
        %v1771 = vld [vmem:[%s384 + $0x110] sm:$0xff]
        %v1772 = vld [vmem:[%s384 + $0x118] sm:$0xff]
        %v1773 = vld [vmem:[%s384 + $0x120] sm:$0xff]
        %v1774 = vld [vmem:[%s384 + $0x128] sm:$0xff]
        %v1775 = vld [vmem:[%s384 + $0x130] sm:$0xff]
        %v1776 = vld [vmem:[%s384 + $0x138] sm:$0xff]
        %v1777 = vld [vmem:[%s384 + $0x140] sm:$0xff]
        %v1778 = vld [vmem:[%s384 + $0x148] sm:$0xff]
        %v1779 = vld [vmem:[%s384 + $0x150] sm:$0xff]
        %v1780 = vld [vmem:[%s384 + $0x158] sm:$0xff]
        %v1781 = vld [vmem:[%s384 + $0x160] sm:$0xff]
        %v1782 = vld [vmem:[%s384 + $0x168] sm:$0xff]
        %v1783 = vld [vmem:[%s384 + $0x170] sm:$0xff]
        %v1784 = vld [vmem:[%s384 + $0x178] sm:$0xff]
        %v1785 = vld [vmem:[%s384 + $0x180] sm:$0xff]
        %v1786 = vld [vmem:[%s384 + $0x188] sm:$0xff]
        %v1787 = vld [vmem:[%s384 + $0x190] sm:$0xff]
        %v1788 = vld [vmem:[%s384 + $0x198] sm:$0xff]
        %v1789 = vld [vmem:[%s384 + $0x1a0] sm:$0xff]
        %v1790 = vld [vmem:[%s384 + $0x1a8] sm:$0xff]
        %v1791 = vld [vmem:[%s384 + $0x1b0] sm:$0xff]
        %v1792 = vld [vmem:[%s384 + $0x1b8] sm:$0xff]
        %v1793 = vld [vmem:[%s384 + $0x1c0] sm:$0xff]
        %v1794 = vld [vmem:[%s384 + $0x1c8] sm:$0xff]
        %v1795 = vld [vmem:[%s384 + $0x1d0] sm:$0xff]
        %v1796 = vld [vmem:[%s384 + $0x1d8] sm:$0xff]
        %v1797 = vld [vmem:[%s384 + $0x1e0] sm:$0xff]
        %v1798 = vld [vmem:[%s384 + $0x1e8] sm:$0xff]
        %v1799 = vld [vmem:[%s384 + $0x1f0] sm:$0xff]
        %v1800 = vld [vmem:[%s384 + $0x1f8] sm:$0xff]
        %v1801 = vmul.f32 %v1673, %v1737
        %v1802 = vmul.f32 %v1674, %v1738
        %v1803 = vmul.f32 %v1675, %v1739
        %v1804 = vmul.f32 %v1676, %v1740
        %v1805 = vmul.f32 %v1677, %v1741
        %v1806 = vmul.f32 %v1678, %v1742
        %v1807 = vmul.f32 %v1679, %v1743
        %v1808 = vmul.f32 %v1680, %v1744
        %v1809 = vmul.f32 %v1681, %v1745
        %v1810 = vmul.f32 %v1682, %v1746
        %v1811 = vmul.f32 %v1683, %v1747
        %v1812 = vmul.f32 %v1684, %v1748
        %v1813 = vmul.f32 %v1685, %v1749
        %v1814 = vmul.f32 %v1686, %v1750
        %v1815 = vmul.f32 %v1687, %v1751
        %v1816 = vmul.f32 %v1688, %v1752
        %v1817 = vmul.f32 %v1689, %v1753
        %v1818 = vmul.f32 %v1690, %v1754
        %v1819 = vmul.f32 %v1691, %v1755
        %v1820 = vmul.f32 %v1692, %v1756
        %v1821 = vmul.f32 %v1693, %v1757
        %v1822 = vmul.f32 %v1694, %v1758
        %v1823 = vmul.f32 %v1695, %v1759
        %v1824 = vmul.f32 %v1696, %v1760
        %v1825 = vmul.f32 %v1697, %v1761
        %v1826 = vmul.f32 %v1698, %v1762
        %v1827 = vmul.f32 %v1699, %v1763
        %v1828 = vmul.f32 %v1700, %v1764
        %v1829 = vmul.f32 %v1701, %v1765
        %v1830 = vmul.f32 %v1702, %v1766
        %v1831 = vmul.f32 %v1703, %v1767
        %v1832 = vmul.f32 %v1704, %v1768
        %v1833 = vmul.f32 %v1705, %v1769
        %v1834 = vmul.f32 %v1706, %v1770
        %v1835 = vmul.f32 %v1707, %v1771
        %v1836 = vmul.f32 %v1708, %v1772
        %v1837 = vmul.f32 %v1709, %v1773
        %v1838 = vmul.f32 %v1710, %v1774
        %v1839 = vmul.f32 %v1711, %v1775
        %v1840 = vmul.f32 %v1712, %v1776
        %v1841 = vmul.f32 %v1713, %v1777
        %v1842 = vmul.f32 %v1714, %v1778
        %v1843 = vmul.f32 %v1715, %v1779
        %v1844 = vmul.f32 %v1716, %v1780
        %v1845 = vmul.f32 %v1717, %v1781
        %v1846 = vmul.f32 %v1718, %v1782
        %v1847 = vmul.f32 %v1719, %v1783
        %v1848 = vmul.f32 %v1720, %v1784
        %v1849 = vmul.f32 %v1721, %v1785
        %v1850 = vmul.f32 %v1722, %v1786
        %v1851 = vmul.f32 %v1723, %v1787
        %v1852 = vmul.f32 %v1724, %v1788
        %v1853 = vmul.f32 %v1725, %v1789
        %v1854 = vmul.f32 %v1726, %v1790
        %v1855 = vmul.f32 %v1727, %v1791
        %v1856 = vmul.f32 %v1728, %v1792
        %v1857 = vmul.f32 %v1729, %v1793
        %v1858 = vmul.f32 %v1730, %v1794
        %v1859 = vmul.f32 %v1731, %v1795
        %v1860 = vmul.f32 %v1732, %v1796
        %v1861 = vmul.f32 %v1733, %v1797
        %v1862 = vmul.f32 %v1734, %v1798
        %v1863 = vmul.f32 %v1735, %v1799
        %v1864 = vmul.f32 %v1736, %v1800
        %v1865 = vpack.c.bf16 %v1802, %v1801
        %v1866 = vpack.c.bf16 %v1804, %v1803
        %v1867 = vpack.c.bf16 %v1806, %v1805
        %v1868 = vpack.c.bf16 %v1808, %v1807
        %v1869 = vpack.c.bf16 %v1810, %v1809
        %v1870 = vpack.c.bf16 %v1812, %v1811
        %v1871 = vpack.c.bf16 %v1814, %v1813
        %v1872 = vpack.c.bf16 %v1816, %v1815
        %v1873 = vpack.c.bf16 %v1818, %v1817
        %v1874 = vpack.c.bf16 %v1820, %v1819
        %v1875 = vpack.c.bf16 %v1822, %v1821
        %v1876 = vpack.c.bf16 %v1824, %v1823
        %v1877 = vpack.c.bf16 %v1826, %v1825
        %v1878 = vpack.c.bf16 %v1828, %v1827
        %v1879 = vpack.c.bf16 %v1830, %v1829
        %v1880 = vpack.c.bf16 %v1832, %v1831
        %v1881 = vpack.c.bf16 %v1834, %v1833
        %v1882 = vpack.c.bf16 %v1836, %v1835
        %v1883 = vpack.c.bf16 %v1838, %v1837
        %v1884 = vpack.c.bf16 %v1840, %v1839
        %v1885 = vpack.c.bf16 %v1842, %v1841
        %v1886 = vpack.c.bf16 %v1844, %v1843
        %v1887 = vpack.c.bf16 %v1846, %v1845
        %v1888 = vpack.c.bf16 %v1848, %v1847
        %v1889 = vpack.c.bf16 %v1850, %v1849
        %v1890 = vpack.c.bf16 %v1852, %v1851
        %v1891 = vpack.c.bf16 %v1854, %v1853
        %v1892 = vpack.c.bf16 %v1856, %v1855
        %v1893 = vpack.c.bf16 %v1858, %v1857
        %v1894 = vpack.c.bf16 %v1860, %v1859
        %v1895 = vpack.c.bf16 %v1862, %v1861
        %v1896 = vpack.c.bf16 %v1864, %v1863
        %v1897 = vld [vmem:[%s366] sm:$0xff]
        %v1898 = vld [vmem:[%s366 + $0x8] sm:$0xff]
        %v1899 = vld [vmem:[%s366 + $0x10] sm:$0xff]
        %v1900 = vld [vmem:[%s366 + $0x18] sm:$0xff]
        %v1901 = vld [vmem:[%s366 + $0x20] sm:$0xff]
        %v1902 = vld [vmem:[%s366 + $0x28] sm:$0xff]
        %v1903 = vld [vmem:[%s366 + $0x30] sm:$0xff]
        %v1904 = vld [vmem:[%s366 + $0x38] sm:$0xff]
        %v1905 = vld [vmem:[%s366 + $0x40] sm:$0xff]
        %v1906 = vld [vmem:[%s366 + $0x48] sm:$0xff]
        %v1907 = vld [vmem:[%s366 + $0x50] sm:$0xff]
        %v1908 = vld [vmem:[%s366 + $0x58] sm:$0xff]
        %v1909 = vld [vmem:[%s366 + $0x60] sm:$0xff]
        %v1910 = vld [vmem:[%s366 + $0x68] sm:$0xff]
        %v1911 = vld [vmem:[%s366 + $0x70] sm:$0xff]
        %v1912 = vld [vmem:[%s366 + $0x78] sm:$0xff]
        %v1913 = vld [vmem:[%s366 + $0x80] sm:$0xff]
        %v1914 = vld [vmem:[%s366 + $0x88] sm:$0xff]
        %v1915 = vld [vmem:[%s366 + $0x90] sm:$0xff]
        %v1916 = vld [vmem:[%s366 + $0x98] sm:$0xff]
        %v1917 = vld [vmem:[%s366 + $0xa0] sm:$0xff]
        %v1918 = vld [vmem:[%s366 + $0xa8] sm:$0xff]
        %v1919 = vld [vmem:[%s366 + $0xb0] sm:$0xff]
        %v1920 = vld [vmem:[%s366 + $0xb8] sm:$0xff]
        %v1921 = vld [vmem:[%s366 + $0xc0] sm:$0xff]
        %v1922 = vld [vmem:[%s366 + $0xc8] sm:$0xff]
        %v1923 = vld [vmem:[%s366 + $0xd0] sm:$0xff]
        %v1924 = vld [vmem:[%s366 + $0xd8] sm:$0xff]
        %v1925 = vld [vmem:[%s366 + $0xe0] sm:$0xff]
        %v1926 = vld [vmem:[%s366 + $0xe8] sm:$0xff]
        %v1927 = vld [vmem:[%s366 + $0xf0] sm:$0xff]
        %v1928 = vld [vmem:[%s366 + $0xf8] sm:$0xff]
        %v1929 = vld [vmem:[%s366 + $0x100] sm:$0xff]
        %v1930 = vld [vmem:[%s366 + $0x108] sm:$0xff]
        %v1931 = vld [vmem:[%s366 + $0x110] sm:$0xff]
        %v1932 = vld [vmem:[%s366 + $0x118] sm:$0xff]
        %v1933 = vld [vmem:[%s366 + $0x120] sm:$0xff]
        %v1934 = vld [vmem:[%s366 + $0x128] sm:$0xff]
        %v1935 = vld [vmem:[%s366 + $0x130] sm:$0xff]
        %v1936 = vld [vmem:[%s366 + $0x138] sm:$0xff]
        %v1937 = vld [vmem:[%s366 + $0x140] sm:$0xff]
        %v1938 = vld [vmem:[%s366 + $0x148] sm:$0xff]
        %v1939 = vld [vmem:[%s366 + $0x150] sm:$0xff]
        %v1940 = vld [vmem:[%s366 + $0x158] sm:$0xff]
        %v1941 = vld [vmem:[%s366 + $0x160] sm:$0xff]
        %v1942 = vld [vmem:[%s366 + $0x168] sm:$0xff]
        %v1943 = vld [vmem:[%s366 + $0x170] sm:$0xff]
        %v1944 = vld [vmem:[%s366 + $0x178] sm:$0xff]
        %v1945 = vld [vmem:[%s366 + $0x180] sm:$0xff]
        %v1946 = vld [vmem:[%s366 + $0x188] sm:$0xff]
        %v1947 = vld [vmem:[%s366 + $0x190] sm:$0xff]
        %v1948 = vld [vmem:[%s366 + $0x198] sm:$0xff]
        %v1949 = vld [vmem:[%s366 + $0x1a0] sm:$0xff]
        %v1950 = vld [vmem:[%s366 + $0x1a8] sm:$0xff]
        %v1951 = vld [vmem:[%s366 + $0x1b0] sm:$0xff]
        %v1952 = vld [vmem:[%s366 + $0x1b8] sm:$0xff]
        %v1953 = vld [vmem:[%s366 + $0x1c0] sm:$0xff]
        %v1954 = vld [vmem:[%s366 + $0x1c8] sm:$0xff]
        %v1955 = vld [vmem:[%s366 + $0x1d0] sm:$0xff]
        %v1956 = vld [vmem:[%s366 + $0x1d8] sm:$0xff]
        %v1957 = vld [vmem:[%s366 + $0x1e0] sm:$0xff]
        %v1958 = vld [vmem:[%s366 + $0x1e8] sm:$0xff]
        %v1959 = vld [vmem:[%s366 + $0x1f0] sm:$0xff]
        %v1960 = vld [vmem:[%s366 + $0x1f8] sm:$0xff]
        %v1961 = vpack.c.bf16 %v1898, %v1897
        %v1962 = vpack.c.bf16 %v1900, %v1899
        %v1963 = vpack.c.bf16 %v1902, %v1901
        %v1964 = vpack.c.bf16 %v1904, %v1903
        %v1965 = vpack.c.bf16 %v1906, %v1905
        %v1966 = vpack.c.bf16 %v1908, %v1907
        %v1967 = vpack.c.bf16 %v1910, %v1909
        %v1968 = vpack.c.bf16 %v1912, %v1911
        %v1969 = vpack.c.bf16 %v1914, %v1913
        %v1970 = vpack.c.bf16 %v1916, %v1915
        %v1971 = vpack.c.bf16 %v1918, %v1917
        %v1972 = vpack.c.bf16 %v1920, %v1919
        %v1973 = vpack.c.bf16 %v1922, %v1921
        %v1974 = vpack.c.bf16 %v1924, %v1923
        %v1975 = vpack.c.bf16 %v1926, %v1925
        %v1976 = vpack.c.bf16 %v1928, %v1927
        %v1977 = vpack.c.bf16 %v1930, %v1929
        %v1978 = vpack.c.bf16 %v1932, %v1931
        %v1979 = vpack.c.bf16 %v1934, %v1933
        %v1980 = vpack.c.bf16 %v1936, %v1935
        %v1981 = vpack.c.bf16 %v1938, %v1937
        %v1982 = vpack.c.bf16 %v1940, %v1939
        %v1983 = vpack.c.bf16 %v1942, %v1941
        %v1984 = vpack.c.bf16 %v1944, %v1943
        %v1985 = vpack.c.bf16 %v1946, %v1945
        %v1986 = vpack.c.bf16 %v1948, %v1947
        %v1987 = vpack.c.bf16 %v1950, %v1949
        %v1988 = vpack.c.bf16 %v1952, %v1951
        %v1989 = vpack.c.bf16 %v1954, %v1953
        %v1990 = vpack.c.bf16 %v1956, %v1955
        %v1991 = vpack.c.bf16 %v1958, %v1957
        %v1992 = vpack.c.bf16 %v1960, %v1959
        %1993 = vmatprep.subr.bf16.mxu0 0
        %1994 = vmatpush1.bf16.msra.mxu0 %v1961
        %1995 = vmatprep.subr.bf16.mxu0 0
        %1996 = vmatpush1.bf16.msra.mxu0 %v1962
        %1997 = vmatprep.subr.bf16.mxu0 0
        %1998 = vmatpush1.bf16.msra.mxu0 %v1963
        %1999 = vmatprep.subr.bf16.mxu0 0
        %2000 = vmatpush1.bf16.msra.mxu0 %v1964
        %2001 = vmatprep.subr.bf16.mxu0 0
        %2002 = vmatpush1.bf16.msra.mxu0 %v1965
        %2003 = vmatprep.subr.bf16.mxu0 0
        %2004 = vmatpush1.bf16.msra.mxu0 %v1966
        %2005 = vmatprep.subr.bf16.mxu0 0
        %2006 = vmatpush1.bf16.msra.mxu0 %v1967
        %2007 = vmatprep.subr.bf16.mxu0 0
        %2008 = vmatpush1.bf16.msra.mxu0 %v1968
        %2009 = vmatprep.subr.bf16.mxu0 0
        %2010 = vmatpush1.bf16.msra.mxu0 0
        %2011 = vmatprep.subr.bf16.mxu0 0
        %2012 = vmatpush1.bf16.msra.mxu0 0
        %2013 = vmatprep.subr.bf16.mxu0 0
        %2014 = vmatpush1.bf16.msra.mxu0 0
        %2015 = vmatprep.subr.bf16.mxu0 0
        %2016 = vmatpush1.bf16.msra.mxu0 0
        %2017 = vmatprep.subr.bf16.mxu0 0
        %2018 = vmatpush1.bf16.msra.mxu0 0
        %2019 = vmatprep.subr.bf16.mxu0 0
        %2020 = vmatpush1.bf16.msra.mxu0 0
        %2021 = vmatprep.subr.bf16.mxu0 0
        %2022 = vmatpush1.bf16.msra.mxu0 0
        %2023 = vmatprep.subr.bf16.mxu0 0
        %2024 = vmatpush1.bf16.msra.mxu0 0
        %2025 = vmatprep.mubr.bf16.mxu0 0
        %2026 = vmatmul.mubr.bf16.gmra.mrb[0].mxu0 %v1865
        %v2027 = vpop.f32.mrb[0].mxu0
        %v2028 = vadd.f32 0.0, %v2027
        %v2029 = vpop.f32.mrb[0].mxu0
        %v2030 = vpop.f32.mrb[0].mxu0
        %v2031 = vadd.f32 0.0, %v2030
        %v2032 = vpop.f32.mrb[0].mxu0
        %2033 = vmatprep.mubr.bf16.mxu0 0
        %2034 = vmatmul.mubr.bf16.gmra.mrb[0].mxu0 %v1866
        %v2035 = vpop.f32.mrb[0].mxu0
        %v2036 = vadd.f32 0.0, %v2035
        %v2037 = vpop.f32.mrb[0].mxu0
        %v2038 = vpop.f32.mrb[0].mxu0
        %v2039 = vadd.f32 0.0, %v2038
        %v2040 = vpop.f32.mrb[0].mxu0
        %2041 = vmatprep.mubr.bf16.mxu0 0
        %2042 = vmatmul.mubr.bf16.gmra.mrb[0].mxu0 %v1867
        %v2043 = vpop.f32.mrb[0].mxu0
        %v2044 = vadd.f32 0.0, %v2043
        %v2045 = vpop.f32.mrb[0].mxu0
        %v2046 = vpop.f32.mrb[0].mxu0
        %v2047 = vadd.f32 0.0, %v2046
        %v2048 = vpop.f32.mrb[0].mxu0
        %2049 = vmatprep.mubr.bf16.mxu0 0
        %2050 = vmatmul.mubr.bf16.gmra.mrb[0].mxu0 %v1868
        %v2051 = vpop.f32.mrb[0].mxu0
        %v2052 = vadd.f32 0.0, %v2051
        %v2053 = vpop.f32.mrb[0].mxu0
        %v2054 = vpop.f32.mrb[0].mxu0
        %v2055 = vadd.f32 0.0, %v2054
        %v2056 = vpop.f32.mrb[0].mxu0
        %2057 = vmatprep.mubr.bf16.mxu0 0
        %2058 = vmatmul.mubr.bf16.gmra.mrb[0].mxu0 %v1869
        %v2059 = vpop.f32.mrb[0].mxu0
        %v2060 = vadd.f32 0.0, %v2059
        %v2061 = vpop.f32.mrb[0].mxu0
        %v2062 = vpop.f32.mrb[0].mxu0
        %v2063 = vadd.f32 0.0, %v2062
        %v2064 = vpop.f32.mrb[0].mxu0
        %2065 = vmatprep.mubr.bf16.mxu0 0
        %2066 = vmatmul.mubr.bf16.gmra.mrb[0].mxu0 %v1870
        %v2067 = vpop.f32.mrb[0].mxu0
        %v2068 = vadd.f32 0.0, %v2067
        %v2069 = vpop.f32.mrb[0].mxu0
        %v2070 = vpop.f32.mrb[0].mxu0
        %v2071 = vadd.f32 0.0, %v2070
        %v2072 = vpop.f32.mrb[0].mxu0
        %2073 = vmatprep.mubr.bf16.mxu0 0
        %2074 = vmatmul.mubr.bf16.gmra.mrb[0].mxu0 %v1871
        %v2075 = vpop.f32.mrb[0].mxu0
        %v2076 = vadd.f32 0.0, %v2075
        %v2077 = vpop.f32.mrb[0].mxu0
        %v2078 = vpop.f32.mrb[0].mxu0
        %v2079 = vadd.f32 0.0, %v2078
        %v2080 = vpop.f32.mrb[0].mxu0
        %2081 = vmatprep.mubr.bf16.mxu0 0
        %2082 = vmatmul.mubr.bf16.gmra.mrb[0].mxu0 %v1872
        %v2083 = vpop.f32.mrb[0].mxu0
        %v2084 = vadd.f32 0.0, %v2083
        %v2085 = vpop.f32.mrb[0].mxu0
        %v2086 = vpop.f32.mrb[0].mxu0
        %v2087 = vadd.f32 0.0, %v2086
        %v2088 = vpop.f32.mrb[0].mxu0
        %2089 = vdwg.mxu0
        %2090 = vmatprep.subr.bf16.mxu0 0
        %2091 = vmatpush1.bf16.msra.mxu0 %v1969
        %2092 = vmatprep.subr.bf16.mxu0 0
        %2093 = vmatpush1.bf16.msra.mxu0 %v1970
        %2094 = vmatprep.subr.bf16.mxu0 0
        %2095 = vmatpush1.bf16.msra.mxu0 %v1971
        %2096 = vmatprep.subr.bf16.mxu0 0
        %2097 = vmatpush1.bf16.msra.mxu0 %v1972
        %2098 = vmatprep.subr.bf16.mxu0 0
        %2099 = vmatpush1.bf16.msra.mxu0 %v1973
        %2100 = vmatprep.subr.bf16.mxu0 0
        %2101 = vmatpush1.bf16.msra.mxu0 %v1974
        %2102 = vmatprep.subr.bf16.mxu0 0
        %2103 = vmatpush1.bf16.msra.mxu0 %v1975
        %2104 = vmatprep.subr.bf16.mxu0 0
        %2105 = vmatpush1.bf16.msra.mxu0 %v1976
        %2106 = vmatprep.subr.bf16.mxu0 0
        %2107 = vmatpush1.bf16.msra.mxu0 0
        %2108 = vmatprep.subr.bf16.mxu0 0
        %2109 = vmatpush1.bf16.msra.mxu0 0
        %2110 = vmatprep.subr.bf16.mxu0 0
        %2111 = vmatpush1.bf16.msra.mxu0 0
        %2112 = vmatprep.subr.bf16.mxu0 0
        %2113 = vmatpush1.bf16.msra.mxu0 0
        %2114 = vmatprep.subr.bf16.mxu0 0
        %2115 = vmatpush1.bf16.msra.mxu0 0
        %2116 = vmatprep.subr.bf16.mxu0 0
        %2117 = vmatpush1.bf16.msra.mxu0 0
        %2118 = vmatprep.subr.bf16.mxu0 0
        %2119 = vmatpush1.bf16.msra.mxu0 0
        %2120 = vmatprep.subr.bf16.mxu0 0
        %2121 = vmatpush1.bf16.msra.mxu0 0
        %2122 = vmatprep.mubr.bf16.mxu0 0
        %2123 = vmatmul.mubr.bf16.gmra.mrb[0].mxu0 %v1873
        %v2124 = vpop.f32.mrb[0].mxu0
        %v2125 = vadd.f32 0.0, %v2124
        %v2126 = vpop.f32.mrb[0].mxu0
        %v2127 = vpop.f32.mrb[0].mxu0
        %v2128 = vadd.f32 0.0, %v2127
        %v2129 = vpop.f32.mrb[0].mxu0
        %2130 = vmatprep.mubr.bf16.mxu0 0
        %2131 = vmatmul.mubr.bf16.gmra.mrb[0].mxu0 %v1874
        %v2132 = vpop.f32.mrb[0].mxu0
        %v2133 = vadd.f32 0.0, %v2132
        %v2134 = vpop.f32.mrb[0].mxu0
        %v2135 = vpop.f32.mrb[0].mxu0
        %v2136 = vadd.f32 0.0, %v2135
        %v2137 = vpop.f32.mrb[0].mxu0
        %2138 = vmatprep.mubr.bf16.mxu0 0
        %2139 = vmatmul.mubr.bf16.gmra.mrb[0].mxu0 %v1875
        %v2140 = vpop.f32.mrb[0].mxu0
        %v2141 = vadd.f32 0.0, %v2140
        %v2142 = vpop.f32.mrb[0].mxu0
        %v2143 = vpop.f32.mrb[0].mxu0
        %v2144 = vadd.f32 0.0, %v2143
        %v2145 = vpop.f32.mrb[0].mxu0
        %2146 = vmatprep.mubr.bf16.mxu0 0
        %2147 = vmatmul.mubr.bf16.gmra.mrb[0].mxu0 %v1876
        %v2148 = vpop.f32.mrb[0].mxu0
        %v2149 = vadd.f32 0.0, %v2148
        %v2150 = vpop.f32.mrb[0].mxu0
        %v2151 = vpop.f32.mrb[0].mxu0
        %v2152 = vadd.f32 0.0, %v2151
        %v2153 = vpop.f32.mrb[0].mxu0
        %2154 = vmatprep.mubr.bf16.mxu0 0
        %2155 = vmatmul.mubr.bf16.gmra.mrb[0].mxu0 %v1877
        %v2156 = vpop.f32.mrb[0].mxu0
        %v2157 = vadd.f32 0.0, %v2156
        %v2158 = vpop.f32.mrb[0].mxu0
        %v2159 = vpop.f32.mrb[0].mxu0
        %v2160 = vadd.f32 0.0, %v2159
        %v2161 = vpop.f32.mrb[0].mxu0
        %2162 = vmatprep.mubr.bf16.mxu0 0
        %2163 = vmatmul.mubr.bf16.gmra.mrb[0].mxu0 %v1878
        %v2164 = vpop.f32.mrb[0].mxu0
        %v2165 = vadd.f32 0.0, %v2164
        %v2166 = vpop.f32.mrb[0].mxu0
        %v2167 = vpop.f32.mrb[0].mxu0
        %v2168 = vadd.f32 0.0, %v2167
        %v2169 = vpop.f32.mrb[0].mxu0
        %2170 = vmatprep.mubr.bf16.mxu0 0
        %2171 = vmatmul.mubr.bf16.gmra.mrb[0].mxu0 %v1879
        %v2172 = vpop.f32.mrb[0].mxu0
        %v2173 = vadd.f32 0.0, %v2172
        %v2174 = vpop.f32.mrb[0].mxu0
        %v2175 = vpop.f32.mrb[0].mxu0
        %v2176 = vadd.f32 0.0, %v2175
        %v2177 = vpop.f32.mrb[0].mxu0
        %2178 = vmatprep.mubr.bf16.mxu0 0
        %2179 = vmatmul.mubr.bf16.gmra.mrb[0].mxu0 %v1880
        %v2180 = vpop.f32.mrb[0].mxu0
        %v2181 = vadd.f32 0.0, %v2180
        %v2182 = vpop.f32.mrb[0].mxu0
        %v2183 = vpop.f32.mrb[0].mxu0
        %v2184 = vadd.f32 0.0, %v2183
        %v2185 = vpop.f32.mrb[0].mxu0
        %2186 = vdwg.mxu0
        %2187 = vmatprep.subr.bf16.mxu0 0
        %2188 = vmatpush1.bf16.msra.mxu0 %v1977
        %2189 = vmatprep.subr.bf16.mxu0 0
        %2190 = vmatpush1.bf16.msra.mxu0 %v1978
        %2191 = vmatprep.subr.bf16.mxu0 0
        %2192 = vmatpush1.bf16.msra.mxu0 %v1979
        %2193 = vmatprep.subr.bf16.mxu0 0
        %2194 = vmatpush1.bf16.msra.mxu0 %v1980
        %2195 = vmatprep.subr.bf16.mxu0 0
        %2196 = vmatpush1.bf16.msra.mxu0 %v1981
        %2197 = vmatprep.subr.bf16.mxu0 0
        %2198 = vmatpush1.bf16.msra.mxu0 %v1982
        %2199 = vmatprep.subr.bf16.mxu0 0
        %2200 = vmatpush1.bf16.msra.mxu0 %v1983
        %2201 = vmatprep.subr.bf16.mxu0 0
        %2202 = vmatpush1.bf16.msra.mxu0 %v1984
        %2203 = vmatprep.subr.bf16.mxu0 0
        %2204 = vmatpush1.bf16.msra.mxu0 0
        %2205 = vmatprep.subr.bf16.mxu0 0
        %2206 = vmatpush1.bf16.msra.mxu0 0
        %2207 = vmatprep.subr.bf16.mxu0 0
        %2208 = vmatpush1.bf16.msra.mxu0 0
        %2209 = vmatprep.subr.bf16.mxu0 0
        %2210 = vmatpush1.bf16.msra.mxu0 0
        %2211 = vmatprep.subr.bf16.mxu0 0
        %2212 = vmatpush1.bf16.msra.mxu0 0
        %2213 = vmatprep.subr.bf16.mxu0 0
        %2214 = vmatpush1.bf16.msra.mxu0 0
        %2215 = vmatprep.subr.bf16.mxu0 0
        %2216 = vmatpush1.bf16.msra.mxu0 0
        %2217 = vmatprep.subr.bf16.mxu0 0
        %2218 = vmatpush1.bf16.msra.mxu0 0
        %2219 = vmatprep.mubr.bf16.mxu0 0
        %2220 = vmatmul.mubr.bf16.gmra.mrb[0].mxu0 %v1881
        %v2221 = vpop.f32.mrb[0].mxu0
        %v2222 = vadd.f32 0.0, %v2221
        %v2223 = vpop.f32.mrb[0].mxu0
        %v2224 = vpop.f32.mrb[0].mxu0
        %v2225 = vadd.f32 0.0, %v2224
        %v2226 = vpop.f32.mrb[0].mxu0
        %2227 = vmatprep.mubr.bf16.mxu0 0
        %2228 = vmatmul.mubr.bf16.gmra.mrb[0].mxu0 %v1882
        %v2229 = vpop.f32.mrb[0].mxu0
        %v2230 = vadd.f32 0.0, %v2229
        %v2231 = vpop.f32.mrb[0].mxu0
        %v2232 = vpop.f32.mrb[0].mxu0
        %v2233 = vadd.f32 0.0, %v2232
        %v2234 = vpop.f32.mrb[0].mxu0
        %2235 = vmatprep.mubr.bf16.mxu0 0
        %2236 = vmatmul.mubr.bf16.gmra.mrb[0].mxu0 %v1883
        %v2237 = vpop.f32.mrb[0].mxu0
        %v2238 = vadd.f32 0.0, %v2237
        %v2239 = vpop.f32.mrb[0].mxu0
        %v2240 = vpop.f32.mrb[0].mxu0
        %v2241 = vadd.f32 0.0, %v2240
        %v2242 = vpop.f32.mrb[0].mxu0
        %2243 = vmatprep.mubr.bf16.mxu0 0
        %2244 = vmatmul.mubr.bf16.gmra.mrb[0].mxu0 %v1884
        %v2245 = vpop.f32.mrb[0].mxu0
        %v2246 = vadd.f32 0.0, %v2245
        %v2247 = vpop.f32.mrb[0].mxu0
        %v2248 = vpop.f32.mrb[0].mxu0
        %v2249 = vadd.f32 0.0, %v2248
        %v2250 = vpop.f32.mrb[0].mxu0
        %2251 = vmatprep.mubr.bf16.mxu0 0
        %2252 = vmatmul.mubr.bf16.gmra.mrb[0].mxu0 %v1885
        %v2253 = vpop.f32.mrb[0].mxu0
        %v2254 = vadd.f32 0.0, %v2253
        %v2255 = vpop.f32.mrb[0].mxu0
        %v2256 = vpop.f32.mrb[0].mxu0
        %v2257 = vadd.f32 0.0, %v2256
        %v2258 = vpop.f32.mrb[0].mxu0
        %2259 = vmatprep.mubr.bf16.mxu0 0
        %2260 = vmatmul.mubr.bf16.gmra.mrb[0].mxu0 %v1886
        %v2261 = vpop.f32.mrb[0].mxu0
        %v2262 = vadd.f32 0.0, %v2261
        %v2263 = vpop.f32.mrb[0].mxu0
        %v2264 = vpop.f32.mrb[0].mxu0
        %v2265 = vadd.f32 0.0, %v2264
        %v2266 = vpop.f32.mrb[0].mxu0
        %2267 = vmatprep.mubr.bf16.mxu0 0
        %2268 = vmatmul.mubr.bf16.gmra.mrb[0].mxu0 %v1887
        %v2269 = vpop.f32.mrb[0].mxu0
        %v2270 = vadd.f32 0.0, %v2269
        %v2271 = vpop.f32.mrb[0].mxu0
        %v2272 = vpop.f32.mrb[0].mxu0
        %v2273 = vadd.f32 0.0, %v2272
        %v2274 = vpop.f32.mrb[0].mxu0
        %2275 = vmatprep.mubr.bf16.mxu0 0
        %2276 = vmatmul.mubr.bf16.gmra.mrb[0].mxu0 %v1888
        %v2277 = vpop.f32.mrb[0].mxu0
        %v2278 = vadd.f32 0.0, %v2277
        %v2279 = vpop.f32.mrb[0].mxu0
        %v2280 = vpop.f32.mrb[0].mxu0
        %v2281 = vadd.f32 0.0, %v2280
        %v2282 = vpop.f32.mrb[0].mxu0
        %2283 = vdwg.mxu0
        %2284 = vmatprep.subr.bf16.mxu0 0
        %2285 = vmatpush1.bf16.msra.mxu0 %v1985
        %2286 = vmatprep.subr.bf16.mxu0 0
        %2287 = vmatpush1.bf16.msra.mxu0 %v1986
        %2288 = vmatprep.subr.bf16.mxu0 0
        %2289 = vmatpush1.bf16.msra.mxu0 %v1987
        %2290 = vmatprep.subr.bf16.mxu0 0
        %2291 = vmatpush1.bf16.msra.mxu0 %v1988
        %2292 = vmatprep.subr.bf16.mxu0 0
        %2293 = vmatpush1.bf16.msra.mxu0 %v1989
        %2294 = vmatprep.subr.bf16.mxu0 0
        %2295 = vmatpush1.bf16.msra.mxu0 %v1990
        %2296 = vmatprep.subr.bf16.mxu0 0
        %2297 = vmatpush1.bf16.msra.mxu0 %v1991
        %2298 = vmatprep.subr.bf16.mxu0 0
        %2299 = vmatpush1.bf16.msra.mxu0 %v1992
        %2300 = vmatprep.subr.bf16.mxu0 0
        %2301 = vmatpush1.bf16.msra.mxu0 0
        %2302 = vmatprep.subr.bf16.mxu0 0
        %2303 = vmatpush1.bf16.msra.mxu0 0
        %2304 = vmatprep.subr.bf16.mxu0 0
        %2305 = vmatpush1.bf16.msra.mxu0 0
        %2306 = vmatprep.subr.bf16.mxu0 0
        %2307 = vmatpush1.bf16.msra.mxu0 0
        %2308 = vmatprep.subr.bf16.mxu0 0
        %2309 = vmatpush1.bf16.msra.mxu0 0
        %2310 = vmatprep.subr.bf16.mxu0 0
        %2311 = vmatpush1.bf16.msra.mxu0 0
        %2312 = vmatprep.subr.bf16.mxu0 0
        %2313 = vmatpush1.bf16.msra.mxu0 0
        %2314 = vmatprep.subr.bf16.mxu0 0
        %2315 = vmatpush1.bf16.msra.mxu0 0
        %2316 = vmatprep.mubr.bf16.mxu0 0
        %2317 = vmatmul.mubr.bf16.gmra.mrb[0].mxu0 %v1889
        %v2318 = vpop.f32.mrb[0].mxu0
        %v2319 = vadd.f32 0.0, %v2318
        %v2320 = vpop.f32.mrb[0].mxu0
        %v2321 = vpop.f32.mrb[0].mxu0
        %v2322 = vadd.f32 0.0, %v2321
        %v2323 = vpop.f32.mrb[0].mxu0
        %2324 = vmatprep.mubr.bf16.mxu0 0
        %2325 = vmatmul.mubr.bf16.gmra.mrb[0].mxu0 %v1890
        %v2326 = vpop.f32.mrb[0].mxu0
        %v2327 = vadd.f32 0.0, %v2326
        %v2328 = vpop.f32.mrb[0].mxu0
        %v2329 = vpop.f32.mrb[0].mxu0
        %v2330 = vadd.f32 0.0, %v2329
        %v2331 = vpop.f32.mrb[0].mxu0
        %2332 = vmatprep.mubr.bf16.mxu0 0
        %2333 = vmatmul.mubr.bf16.gmra.mrb[0].mxu0 %v1891
        %v2334 = vpop.f32.mrb[0].mxu0
        %v2335 = vadd.f32 0.0, %v2334
        %v2336 = vpop.f32.mrb[0].mxu0
        %v2337 = vpop.f32.mrb[0].mxu0
        %v2338 = vadd.f32 0.0, %v2337
        %v2339 = vpop.f32.mrb[0].mxu0
        %2340 = vmatprep.mubr.bf16.mxu0 0
        %2341 = vmatmul.mubr.bf16.gmra.mrb[0].mxu0 %v1892
        %v2342 = vpop.f32.mrb[0].mxu0
        %v2343 = vadd.f32 0.0, %v2342
        %v2344 = vpop.f32.mrb[0].mxu0
        %v2345 = vpop.f32.mrb[0].mxu0
        %v2346 = vadd.f32 0.0, %v2345
        %v2347 = vpop.f32.mrb[0].mxu0
        %2348 = vmatprep.mubr.bf16.mxu0 0
        %2349 = vmatmul.mubr.bf16.gmra.mrb[0].mxu0 %v1893
        %v2350 = vpop.f32.mrb[0].mxu0
        %v2351 = vadd.f32 0.0, %v2350
        %v2352 = vpop.f32.mrb[0].mxu0
        %v2353 = vpop.f32.mrb[0].mxu0
        %v2354 = vadd.f32 0.0, %v2353
        %v2355 = vpop.f32.mrb[0].mxu0
        %2356 = vmatprep.mubr.bf16.mxu0 0
        %2357 = vmatmul.mubr.bf16.gmra.mrb[0].mxu0 %v1894
        %v2358 = vpop.f32.mrb[0].mxu0
        %v2359 = vadd.f32 0.0, %v2358
        %v2360 = vpop.f32.mrb[0].mxu0
        %v2361 = vpop.f32.mrb[0].mxu0
        %v2362 = vadd.f32 0.0, %v2361
        %v2363 = vpop.f32.mrb[0].mxu0
        %2364 = vmatprep.mubr.bf16.mxu0 0
        %2365 = vmatmul.mubr.bf16.gmra.mrb[0].mxu0 %v1895
        %v2366 = vpop.f32.mrb[0].mxu0
        %v2367 = vadd.f32 0.0, %v2366
        %v2368 = vpop.f32.mrb[0].mxu0
        %v2369 = vpop.f32.mrb[0].mxu0
        %v2370 = vadd.f32 0.0, %v2369
        %v2371 = vpop.f32.mrb[0].mxu0
        %2372 = vmatprep.mubr.bf16.mxu0 0
        %2373 = vmatmul.mubr.bf16.gmra.mrb[0].mxu0 %v1896
        %v2374 = vpop.f32.mrb[0].mxu0
        %v2375 = vadd.f32 0.0, %v2374
        %v2376 = vpop.f32.mrb[0].mxu0
        %v2377 = vpop.f32.mrb[0].mxu0
        %v2378 = vadd.f32 0.0, %v2377
        %v2379 = vpop.f32.mrb[0].mxu0
        %2380 = vdwg.mxu0
        %2381 = vst [vmem:[%s430] sm:$0xff] %v2028
        %2382 = vst [vmem:[%s430 + $0x8] sm:$0xff] %v2031
        %2383 = vst [vmem:[%s430 + $0x10] sm:$0xff] %v2036
        %2384 = vst [vmem:[%s430 + $0x18] sm:$0xff] %v2039
        %2385 = vst [vmem:[%s430 + $0x20] sm:$0xff] %v2044
        %2386 = vst [vmem:[%s430 + $0x28] sm:$0xff] %v2047
        %2387 = vst [vmem:[%s430 + $0x30] sm:$0xff] %v2052
        %2388 = vst [vmem:[%s430 + $0x38] sm:$0xff] %v2055
        %2389 = vst [vmem:[%s430 + $0x40] sm:$0xff] %v2060
        %2390 = vst [vmem:[%s430 + $0x48] sm:$0xff] %v2063
        %2391 = vst [vmem:[%s430 + $0x50] sm:$0xff] %v2068
        %2392 = vst [vmem:[%s430 + $0x58] sm:$0xff] %v2071
        %2393 = vst [vmem:[%s430 + $0x60] sm:$0xff] %v2076
        %2394 = vst [vmem:[%s430 + $0x68] sm:$0xff] %v2079
        %2395 = vst [vmem:[%s430 + $0x70] sm:$0xff] %v2084
        %2396 = vst [vmem:[%s430 + $0x78] sm:$0xff] %v2087
        %2397 = vst [vmem:[%s430 + $0x80] sm:$0xff] %v2125
        %2398 = vst [vmem:[%s430 + $0x88] sm:$0xff] %v2128
        %2399 = vst [vmem:[%s430 + $0x90] sm:$0xff] %v2133
        %2400 = vst [vmem:[%s430 + $0x98] sm:$0xff] %v2136
        %2401 = vst [vmem:[%s430 + $0xa0] sm:$0xff] %v2141
        %2402 = vst [vmem:[%s430 + $0xa8] sm:$0xff] %v2144
        %2403 = vst [vmem:[%s430 + $0xb0] sm:$0xff] %v2149
        %2404 = vst [vmem:[%s430 + $0xb8] sm:$0xff] %v2152
        %2405 = vst [vmem:[%s430 + $0xc0] sm:$0xff] %v2157
        %2406 = vst [vmem:[%s430 + $0xc8] sm:$0xff] %v2160
        %2407 = vst [vmem:[%s430 + $0xd0] sm:$0xff] %v2165
        %2408 = vst [vmem:[%s430 + $0xd8] sm:$0xff] %v2168
        %2409 = vst [vmem:[%s430 + $0xe0] sm:$0xff] %v2173
        %2410 = vst [vmem:[%s430 + $0xe8] sm:$0xff] %v2176
        %2411 = vst [vmem:[%s430 + $0xf0] sm:$0xff] %v2181
        %2412 = vst [vmem:[%s430 + $0xf8] sm:$0xff] %v2184
        %2413 = vst [vmem:[%s430 + $0x100] sm:$0xff] %v2222
        %2414 = vst [vmem:[%s430 + $0x108] sm:$0xff] %v2225
        %2415 = vst [vmem:[%s430 + $0x110] sm:$0xff] %v2230
        %2416 = vst [vmem:[%s430 + $0x118] sm:$0xff] %v2233
        %2417 = vst [vmem:[%s430 + $0x120] sm:$0xff] %v2238
        %2418 = vst [vmem:[%s430 + $0x128] sm:$0xff] %v2241
        %2419 = vst [vmem:[%s430 + $0x130] sm:$0xff] %v2246
        %2420 = vst [vmem:[%s430 + $0x138] sm:$0xff] %v2249
        %2421 = vst [vmem:[%s430 + $0x140] sm:$0xff] %v2254
        %2422 = vst [vmem:[%s430 + $0x148] sm:$0xff] %v2257
        %2423 = vst [vmem:[%s430 + $0x150] sm:$0xff] %v2262
        %2424 = vst [vmem:[%s430 + $0x158] sm:$0xff] %v2265
        %2425 = vst [vmem:[%s430 + $0x160] sm:$0xff] %v2270
        %2426 = vst [vmem:[%s430 + $0x168] sm:$0xff] %v2273
        %2427 = vst [vmem:[%s430 + $0x170] sm:$0xff] %v2278
        %2428 = vst [vmem:[%s430 + $0x178] sm:$0xff] %v2281
        %2429 = vst [vmem:[%s430 + $0x180] sm:$0xff] %v2319
        %2430 = vst [vmem:[%s430 + $0x188] sm:$0xff] %v2322
        %2431 = vst [vmem:[%s430 + $0x190] sm:$0xff] %v2327
        %2432 = vst [vmem:[%s430 + $0x198] sm:$0xff] %v2330
        %2433 = vst [vmem:[%s430 + $0x1a0] sm:$0xff] %v2335
        %2434 = vst [vmem:[%s430 + $0x1a8] sm:$0xff] %v2338
        %2435 = vst [vmem:[%s430 + $0x1b0] sm:$0xff] %v2343
        %2436 = vst [vmem:[%s430 + $0x1b8] sm:$0xff] %v2346
        %2437 = vst [vmem:[%s430 + $0x1c0] sm:$0xff] %v2351
        %2438 = vst [vmem:[%s430 + $0x1c8] sm:$0xff] %v2354
        %2439 = vst [vmem:[%s430 + $0x1d0] sm:$0xff] %v2359
        %2440 = vst [vmem:[%s430 + $0x1d8] sm:$0xff] %v2362
        %2441 = vst [vmem:[%s430 + $0x1e0] sm:$0xff] %v2367
        %2442 = vst [vmem:[%s430 + $0x1e8] sm:$0xff] %v2370
        %2443 = vst [vmem:[%s430 + $0x1f0] sm:$0xff] %v2375
        %2444 = vst [vmem:[%s430 + $0x1f8] sm:$0xff] %v2378
        %s2445 = sand.u32 %s188, 1
        %s2446 = scalar_lea.sflag [#allocation4], %s2445
        %s2447 = sand.u32 %s188, 1
        %s2448 = smul.addr %s2447, 512
        %s2449 = scalar_lea.vmem [#allocation11], %s2448
        // Predicated region
        $region61: #{tpu_custom_call.1} parent=39 // pred_check
          %p2450 = pneg %p198
        $region62: #{tpu_custom_call.1} parent=39 // pred_check_branch
          %2452 = sbr.rel (%p2450) target = $region64
        $region63: #{tpu_custom_call.1} parent=39 // pred_region
          %s2453 = smul.u32 4, %s33
          %s2455 = ssub.s32 8192, 8192
          %2456 = vsyncadd %s2446, %s2455
          %s2457 = smul.addr %s2453, 16
          %s2458 = smul.addr %s32, 64
          %s2459 = sadd.s32 %s2457, %s2458
          %s2460 = smul.addr %s2459, 128
          %s2461 = scalar_lea.hbm %s5, %s2460
          %s2462 = sshll.u32 %s2449, 4
          %s2463 = int_to_ptr.vmem [resolvable:$true] %s2462
          %2468 = dma.vmem_to_hbm [thread:$0]  %s2463, 8192, %s2461, %s2446, 128, 128, 8
        $region64: #{tpu_custom_call.1} parent=39 // pred_fallthru
          _
      $region40: #{tpu_custom_call.1} parent=5 // pred_fallthru
        _
      %p2469 = scmp.le.s32.totalorder 2, %s23
      // Predicated region
      $region65: #{tpu_custom_call.1} parent=5 // pred_check
        %p2470 = pneg %p2469
      $region66: #{tpu_custom_call.1} parent=5 // pred_check_branch
        %2472 = sbr.rel (%p2470) target = $region68
      $region67: #{tpu_custom_call.1} parent=5 // pred_region
        %s2473 = ssub.s32 %s23, 2
        // Predicated region
        $region69: #{tpu_custom_call.1} parent=67 // pred_check
          %p2474 = pneg %p204
        $region70: #{tpu_custom_call.1} parent=67 // pred_check_branch
          %2476 = sbr.rel (%p2474) target = $region72
        $region71: #{tpu_custom_call.1} parent=67 // pred_region
          %s2477 = sand.u32 %s189, 1
          %s2478 = scalar_lea.sflag [#allocation4], %s2477
          %s2479 = sand.u32 %s189, 1
          %s2480 = smul.addr %s2479, 512
          %s2481 = scalar_lea.vmem [#allocation11], %s2480
          %2482 = dma.done %s2478, 8192
        $region72: #{tpu_custom_call.1} parent=67 // pred_fallthru
          _
      $region68: #{tpu_custom_call.1} parent=5 // pred_fallthru
        _
    $region6: #{tpu_custom_call.1} parent=1 // loop_footer
      %s27 = sadd.s32 1, %s23
    $region7: #{tpu_custom_call.1} parent=1 // loop_footer_branch
      %22 = sbr.rel target = $region3
    $region8: #{tpu_custom_call.1} parent=1 // loop_exit
      _
    %2483 = vsyncpa [#allocation3], 1
    %s2484 = scalar_lea.sflag [#allocation3], 1
    %2485 = vsyncpa %s2484, 1
    %2486 = vsyncpa [#allocation6], 1
    %s2487 = scalar_lea.sflag [#allocation6], 1
    %2488 = vsyncpa %s2487, 1
    %2489 = vsyncpa [#allocation9], 1
    %s2490 = scalar_lea.sflag [#allocation9], 1
    %2491 = vsyncpa %s2490, 1
    %2492 = vsyncpa [#allocation4], 1
    %s2493 = scalar_lea.sflag [#allocation4], 1
    %2494 = vsyncpa %s2493, 1

</llo_original>
